<compile_context>
chip_gen: v6e
topology: v6e:2x2x1
jax: 0.10.0
libtpu: 0.0.40
codegen_flags: <defaults>
</compile_context>

<pallas_src>
import functools

import jax
import jax.numpy as jnp
from jax.experimental import pallas as pl
from jax.experimental.pallas import tpu as pltpu


def _round_up(x, m):
    return (x + m - 1) // m * m


def _default_blocks():
    """Per-TPU-generation default tile sizes (block_m, block_n)."""
    try:
        kind = jax.devices()[0].device_kind.lower()
    except Exception:
        kind = ""
    if any(t in kind for t in ("v2", "v3", "v4", "v5")):
        return 512, 128          # 128-wide MXU: Tn=128 already saturates it.
    return 512, 256              # v6e / v7x: 2x256^2 MXU wants Tn >= 256.


def _choose_tho(Ho, Wo, block_m, other_steps, min_steps=4):
    """Row-tile height: divides Ho, keeps Tho*Wo <= block_m, and leaves
    enough total grid steps to occupy both TensorCores on v7x."""
    divisors = [d for d in range(1, Ho + 1) if Ho % d == 0]
    fitting = [d for d in divisors if d * Wo <= block_m] or [1]
    tho = max(fitting)
    while other_steps * (Ho // tho) < min_steps and tho > 1:
        smaller = [d for d in divisors if d < tho]
        if not smaller:
            break
        tho = max(smaller)
    return tho


def _bnconv_kernel(x_ref, w_ref, s_ref, b_ref, o_ref, p_ref, *,
                   kh, kw, c, tho, wo, tn, stride, dilation, relu):
    # x_ref: (1, H_pad, W_pad, C) bf16 -- full padded image for this batch
    #        element, resident across the output-channel / row grid axes.
    # w_ref: (K, Tn)  bf16 conv weight (unscaled), K = KH*KW*C.
    # s_ref: (1, Tn)  f32 folded BN scale.
    # b_ref: (1, Tn)  f32 folded BN bias (+ conv bias).
    # o_ref: (1, Tho, Wo, Tn) output tile (lane-dense: Tn % 128 == 0).
    # p_ref: (Tho, Wo, K) bf16 VMEM scratch for the im2col patch block.
    r = pl.program_id(2)
    h0 = pl.multiple_of(r * (tho * stride), tho * stride)

    # In-kernel im2col: KH*KW small VMEM->VMEM copies from the resident image
    # into the patch scratch.  Every column of p_ref is overwritten each
    # step, so no zero-initialization is required.
    for i in range(kh):
        for j in range(kw):
            c0 = (i * kw + j) * c
            if stride == 1:
                tap = x_ref[0,
                            pl.ds(h0 + i * dilation, tho),
                            pl.ds(j * dilation, wo), :]
            else:
                # TODO(synk): strided in-kernel gather path (stride > 1) is
                # exercised less than the stride == 1 path.
                tap = x_ref[0,
                            pl.ds(h0 + i * dilation, tho, stride),
                            pl.ds(j * dilation, wo, stride), :]
            p_ref[:, :, c0:c0 + c] = tap

    # Single merged-K MXU contraction, f32 accumulation.
    patches = p_ref[...].reshape(tho * wo, kh * kw * c)
    acc = jnp.dot(patches, w_ref[...], preferred_element_type=jnp.float32)

    # BN (running stats) + optional conv bias + ReLU, all in f32.
    y = acc * s_ref[...] + b_ref[...]
    if relu:
        y = jnp.maximum(y, 0.0)
    o_ref[...] = y.reshape(1, tho, wo, tn).astype(o_ref.dtype)


def bnconv_forward(x_nchw, weight_oikk, gamma, beta, running_mean,
                   running_var, *, stride=1, padding=0, dilation=1, groups=1,
                   conv_bias=None, eps=1e-5, relu=True, bn=True,
                   compute_dtype=jnp.bfloat16, store_dtype=jnp.bfloat16,
                   out_layout="NCHW", block_m=None, block_n=None):
    """Conv2d + (inference) BatchNorm2d + ReLU.

    x: (N, C, H, W) -> (N, O, Ho, Wo) in NCHW (or NHWC if out_layout="NHWC").
    Output dtype is `store_dtype` (bf16 by default, per HBM-traffic budget).
    """
    assert groups == 1, "TODO(synk): grouped conv not implemented"
    N, C, H, W = x_nchw.shape
    O, Ci, KH, KW = weight_oikk.shape
    assert Ci == C

    Ho = (H + 2 * padding - dilation * (KH - 1) - 1) // stride + 1
    Wo = (W + 2 * padding - dilation * (KW - 1) - 1) // stride + 1
    K = KH * KW * C

    # --- wrapper glue: NHWC layout + spatial zero-padding (one pass over x).
    x = jnp.transpose(x_nchw.astype(compute_dtype), (0, 2, 3, 1))       # NHWC
    x = jnp.pad(x, ((0, 0), (padding, padding), (padding, padding), (0, 0)))
    H_pad, W_pad = H + 2 * padding, W + 2 * padding

    # Fold BatchNorm (running stats) into per-output-channel scale / bias;
    # both are applied in the kernel's f32 epilogue (weight stays unscaled).
    if bn:
        scale = gamma.astype(jnp.float32) / jnp.sqrt(
            running_var.astype(jnp.float32) + eps)
        bias = beta.astype(jnp.float32) - running_mean.astype(jnp.float32) * scale
    else:
        scale = jnp.ones((O,), jnp.float32)
        bias = jnp.zeros((O,), jnp.float32)
    if conv_bias is not None:
        bias = bias + scale * conv_bias.astype(jnp.float32)

    # (O,C,KH,KW) -> (KH,KW,C,O) -> (K,O); column order matches the in-kernel
    # im2col layout (i, j, c).
    w = jnp.transpose(weight_oikk, (2, 3, 1, 0)).reshape(K, O)
    w = w.astype(compute_dtype)

    # --- tiling --------------------------------------------------------------
    if block_m is None or block_n is None:
        d_m, d_n = _default_blocks()
        block_m = block_m or d_m
        block_n = block_n or d_n
    Tn = min(block_n, _round_up(O, 128))       # lane-dense output stores
    O_pad = _round_up(O, Tn)
    n_o_tiles = O_pad // Tn
    Tho = _choose_tho(Ho, Wo, block_m, other_steps=N * n_o_tiles)
    n_row_tiles = Ho // Tho

    w = jnp.pad(w, ((0, 0), (0, O_pad - O)))
    scale = jnp.pad(scale, (0, O_pad - O)).reshape(1, O_pad)
    bias = jnp.pad(bias, (0, O_pad - O)).reshape(1, O_pad)

    kernel = functools.partial(
        _bnconv_kernel, kh=KH, kw=KW, c=C, tho=Tho, wo=Wo, tn=Tn,
        stride=stride, dilation=dilation, relu=relu)

    # Rough (tile-storage aware) VMEM budget; only raise the scoped limit
    # when the working set actually needs it.
    def _buf(sub, lane, itemsize):
        sub_tile = 8 * (4 // itemsize)
        return _round_up(sub, sub_tile) * _round_up(lane, 128) * itemsize

    est = (2 * (H_pad * _buf(W_pad, C, 2)           # x image (double buffered)
                + _buf(K, Tn, 2)                    # weight tile
                + 2 * _buf(1, Tn, 4)                # scale + bias
                + Tho * _buf(Wo, Tn, 2))            # output tile
           + Tho * _buf(Wo, K, 2))                  # patch scratch
    vmem_limit = int(est * 1.5) if est > 24 * 1024 * 1024 else None

    # Grid order (n, o, r): the image block index depends only on n (DMA'd
    # once per image), the weight/scale/bias tiles only change when o does.
    grid = (N, n_o_tiles, n_row_tiles)

    out_nhwc = pl.pallas_call(
        kernel,
        out_shape=jax.ShapeDtypeStruct((N, Ho, Wo, O_pad), store_dtype),
        grid_spec=pltpu.PrefetchScalarGridSpec(
            num_scalar_prefetch=0,
            grid=grid,
            in_specs=[
                pl.BlockSpec((1, H_pad, W_pad, C), lambda n, o, r: (n, 0, 0, 0)),
                pl.BlockSpec((K, Tn), lambda n, o, r: (0, o)),
                pl.BlockSpec((1, Tn), lambda n, o, r: (0, o)),
                pl.BlockSpec((1, Tn), lambda n, o, r: (0, o)),
            ],
            out_specs=pl.BlockSpec((1, Tho, Wo, Tn),
                                   lambda n, o, r: (n, r, 0, o)),
            scratch_shapes=[pltpu.VMEM((Tho, Wo, K), compute_dtype)],
        ),
        compiler_params=pltpu.CompilerParams(
            dimension_semantics=("parallel", "parallel", "parallel"),
            vmem_limit_bytes=vmem_limit),
    )(x, w, scale, bias)

    out = out_nhwc[..., :O]                       # drop O padding (store dtype)
    if out_layout == "NHWC":
        return out
    return jnp.transpose(out, (0, 3, 1, 2))       # NCHW, still store dtype


def _reference(x_nchw, weight, gamma, beta, mean, var, *, padding, eps, relu):
    y = jax.lax.conv_general_dilated(
        x_nchw, weight,
        window_strides=(1, 1),
        padding=[(padding, padding), (padding, padding)],
        dimension_numbers=("NCHW", "OIHW", "NCHW"))
    s = (gamma / jnp.sqrt(var + eps)).reshape(1, -1, 1, 1)
    b = (beta - mean * gamma / jnp.sqrt(var + eps)).reshape(1, -1, 1, 1)
    y = y * s + b
    if relu:
        y = jnp.maximum(y, 0.0)
    return y


if __name__ == "__main__":
    key = jax.random.PRNGKey(0)
    k1, k2, k3, k4, k5, k6 = jax.random.split(key, 6)

    N, C, H, W = 2, 4, 16, 16
    O, KH, KW = 8, 3, 3
    padding = 1

    x = jax.random.normal(k1, (N, C, H, W), jnp.float32)
    weight = jax.random.normal(k2, (O, C, KH, KW), jnp.float32) * 0.1
    gamma = 1.0 + 0.1 * jax.random.normal(k3, (O,), jnp.float32)
    beta = 0.1 * jax.random.normal(k4, (O,), jnp.float32)
    running_mean = 0.05 * jax.random.normal(k5, (O,), jnp.float32)
    running_var = jnp.abs(1.0 + 0.1 * jax.random.normal(k6, (O,), jnp.float32))

    out = bnconv_forward(x, weight, gamma, beta, running_mean, running_var,
                         stride=1, padding=padding, dilation=1, groups=1,
                         eps=1e-5, relu=True, bn=True)
    out = jax.block_until_ready(out)

    ref = _reference(x, weight, gamma, beta, running_mean, running_var,
                     padding=padding, eps=1e-5, relu=True)
    assert out.shape == (N, O, H, W)
    # bf16 inputs + bf16 output store (f32 MXU accumulation / f32 epilogue)
    # -> loosen tolerance vs the f32 reference.
    err = jnp.max(jnp.abs(out.astype(jnp.float32) - ref))
    assert err < 6e-2, err

    print("KERNEL_OK")
</pallas_src>

<mosaic_0001>
module attributes {stable_mosaic.version = 11 : i64} {
  func.func @_bnconv_kernel(%arg0: i32, %arg1: i32, %arg2: i32, %arg3: memref<1x18x18x4xbf16, #tpu.memory_space<vmem>>, %arg4: memref<36x128xbf16, #tpu.memory_space<vmem>>, %arg5: memref<1x128xf32, #tpu.memory_space<vmem>>, %arg6: memref<1x128xf32, #tpu.memory_space<vmem>>, %arg7: memref<1x8x16x128xbf16, #tpu.memory_space<vmem>>, %arg8: memref<8x16x36xbf16, #tpu.memory_space<vmem>>) attributes {dimension_semantics = [#tpu.dimension_semantics<parallel>, #tpu.dimension_semantics<parallel>, #tpu.dimension_semantics<parallel>], iteration_bounds = array<i64: 2, 1, 2>, scalar_prefetch = 0 : i64, scratch_operands = 1 : i64, tpu.core_type = #tpu.core_type<tc>, window_params = [{transform_indices = @transform_0, window_bounds = array<i64: 1, 18, 18, 4>}, {transform_indices = @transform_1, window_bounds = array<i64: 36, 128>}, {transform_indices = @transform_2, window_bounds = array<i64: 1, 128>}, {transform_indices = @transform_3, window_bounds = array<i64: 1, 128>}, {transform_indices = @transform_4, window_bounds = array<i64: 1, 8, 16, 128>}]} {
    %c8_i32 = arith.constant 8 : i32
    %0 = arith.muli %arg2, %c8_i32 : i32
    %1 = tpu.assume_multiple %0, 8 : i32
    %c0_i32 = arith.constant 0 : i32
    %2 = arith.addi %1, %c0_i32 : i32
    %c0 = arith.constant 0 : index
    %3 = arith.index_cast %2 : i32 to index
    %c0_0 = arith.constant 0 : index
    %c0_1 = arith.constant 0 : index
    %4 = vector.load %arg3[%c0, %3, %c0_0, %c0_1] : memref<1x18x18x4xbf16, #tpu.memory_space<vmem>>, vector<1x8x16x4xbf16>
    %5 = vector.shape_cast %4 : vector<1x8x16x4xbf16> to vector<8x16x4xbf16>
    %c0_2 = arith.constant 0 : index
    %c0_3 = arith.constant 0 : index
    %c0_4 = arith.constant 0 : index
    %6 = vector.load %arg8[%c0_2, %c0_3, %c0_4] : memref<8x16x36xbf16, #tpu.memory_space<vmem>>, vector<8x16x4xbf16>
    tpu.vector_store %arg8[%c0_2, %c0_3, %c0_4], %5 {strides = array<i32>} : memref<8x16x36xbf16, #tpu.memory_space<vmem>>, vector<8x16x4xbf16>,
    %c0_i32_5 = arith.constant 0 : i32
    %7 = arith.addi %1, %c0_i32_5 : i32
    %c0_6 = arith.constant 0 : index
    %8 = arith.index_cast %7 : i32 to index
    %c1 = arith.constant 1 : index
    %c0_7 = arith.constant 0 : index
    %9 = vector.load %arg3[%c0_6, %8, %c1, %c0_7] : memref<1x18x18x4xbf16, #tpu.memory_space<vmem>>, vector<1x8x16x4xbf16>
    %10 = vector.shape_cast %9 : vector<1x8x16x4xbf16> to vector<8x16x4xbf16>
    %c0_8 = arith.constant 0 : index
    %c0_9 = arith.constant 0 : index
    %c4 = arith.constant 4 : index
    %11 = vector.load %arg8[%c0_8, %c0_9, %c4] : memref<8x16x36xbf16, #tpu.memory_space<vmem>>, vector<8x16x4xbf16>
    tpu.vector_store %arg8[%c0_8, %c0_9, %c4], %10 {strides = array<i32>} : memref<8x16x36xbf16, #tpu.memory_space<vmem>>, vector<8x16x4xbf16>,
    %c0_i32_10 = arith.constant 0 : i32
    %12 = arith.addi %1, %c0_i32_10 : i32
    %c0_11 = arith.constant 0 : index
    %13 = arith.index_cast %12 : i32 to index
    %c2 = arith.constant 2 : index
    %c0_12 = arith.constant 0 : index
    %14 = vector.load %arg3[%c0_11, %13, %c2, %c0_12] : memref<1x18x18x4xbf16, #tpu.memory_space<vmem>>, vector<1x8x16x4xbf16>
    %15 = vector.shape_cast %14 : vector<1x8x16x4xbf16> to vector<8x16x4xbf16>
    %c0_13 = arith.constant 0 : index
    %c0_14 = arith.constant 0 : index
    %c8 = arith.constant 8 : index
    %16 = vector.load %arg8[%c0_13, %c0_14, %c8] : memref<8x16x36xbf16, #tpu.memory_space<vmem>>, vector<8x16x4xbf16>
    tpu.vector_store %arg8[%c0_13, %c0_14, %c8], %15 {strides = array<i32>} : memref<8x16x36xbf16, #tpu.memory_space<vmem>>, vector<8x16x4xbf16>,
    %c1_i32 = arith.constant 1 : i32
    %17 = arith.addi %1, %c1_i32 : i32
    %c0_15 = arith.constant 0 : index
    %18 = arith.index_cast %17 : i32 to index
    %c0_16 = arith.constant 0 : index
    %c0_17 = arith.constant 0 : index
    %19 = vector.load %arg3[%c0_15, %18, %c0_16, %c0_17] : memref<1x18x18x4xbf16, #tpu.memory_space<vmem>>, vector<1x8x16x4xbf16>
    %20 = vector.shape_cast %19 : vector<1x8x16x4xbf16> to vector<8x16x4xbf16>
    %c0_18 = arith.constant 0 : index
    %c0_19 = arith.constant 0 : index
    %c12 = arith.constant 12 : index
    %21 = vector.load %arg8[%c0_18, %c0_19, %c12] : memref<8x16x36xbf16, #tpu.memory_space<vmem>>, vector<8x16x4xbf16>
    tpu.vector_store %arg8[%c0_18, %c0_19, %c12], %20 {strides = array<i32>} : memref<8x16x36xbf16, #tpu.memory_space<vmem>>, vector<8x16x4xbf16>,
    %c1_i32_20 = arith.constant 1 : i32
    %22 = arith.addi %1, %c1_i32_20 : i32
    %c0_21 = arith.constant 0 : index
    %23 = arith.index_cast %22 : i32 to index
    %c1_22 = arith.constant 1 : index
    %c0_23 = arith.constant 0 : index
    %24 = vector.load %arg3[%c0_21, %23, %c1_22, %c0_23] : memref<1x18x18x4xbf16, #tpu.memory_space<vmem>>, vector<1x8x16x4xbf16>
    %25 = vector.shape_cast %24 : vector<1x8x16x4xbf16> to vector<8x16x4xbf16>
    %c0_24 = arith.constant 0 : index
    %c0_25 = arith.constant 0 : index
    %c16 = arith.constant 16 : index
    %26 = vector.load %arg8[%c0_24, %c0_25, %c16] : memref<8x16x36xbf16, #tpu.memory_space<vmem>>, vector<8x16x4xbf16>
    tpu.vector_store %arg8[%c0_24, %c0_25, %c16], %25 {strides = array<i32>} : memref<8x16x36xbf16, #tpu.memory_space<vmem>>, vector<8x16x4xbf16>,
    %c1_i32_26 = arith.constant 1 : i32
    %27 = arith.addi %1, %c1_i32_26 : i32
    %c0_27 = arith.constant 0 : index
    %28 = arith.index_cast %27 : i32 to index
    %c2_28 = arith.constant 2 : index
    %c0_29 = arith.constant 0 : index
    %29 = vector.load %arg3[%c0_27, %28, %c2_28, %c0_29] : memref<1x18x18x4xbf16, #tpu.memory_space<vmem>>, vector<1x8x16x4xbf16>
    %30 = vector.shape_cast %29 : vector<1x8x16x4xbf16> to vector<8x16x4xbf16>
    %c0_30 = arith.constant 0 : index
    %c0_31 = arith.constant 0 : index
    %c20 = arith.constant 20 : index
    %31 = vector.load %arg8[%c0_30, %c0_31, %c20] : memref<8x16x36xbf16, #tpu.memory_space<vmem>>, vector<8x16x4xbf16>
    tpu.vector_store %arg8[%c0_30, %c0_31, %c20], %30 {strides = array<i32>} : memref<8x16x36xbf16, #tpu.memory_space<vmem>>, vector<8x16x4xbf16>,
    %c2_i32 = arith.constant 2 : i32
    %32 = arith.addi %1, %c2_i32 : i32
    %c0_32 = arith.constant 0 : index
    %33 = arith.index_cast %32 : i32 to index
    %c0_33 = arith.constant 0 : index
    %c0_34 = arith.constant 0 : index
    %34 = vector.load %arg3[%c0_32, %33, %c0_33, %c0_34] : memref<1x18x18x4xbf16, #tpu.memory_space<vmem>>, vector<1x8x16x4xbf16>
    %35 = vector.shape_cast %34 : vector<1x8x16x4xbf16> to vector<8x16x4xbf16>
    %c0_35 = arith.constant 0 : index
    %c0_36 = arith.constant 0 : index
    %c24 = arith.constant 24 : index
    %36 = vector.load %arg8[%c0_35, %c0_36, %c24] : memref<8x16x36xbf16, #tpu.memory_space<vmem>>, vector<8x16x4xbf16>
    tpu.vector_store %arg8[%c0_35, %c0_36, %c24], %35 {strides = array<i32>} : memref<8x16x36xbf16, #tpu.memory_space<vmem>>, vector<8x16x4xbf16>,
    %c2_i32_37 = arith.constant 2 : i32
    %37 = arith.addi %1, %c2_i32_37 : i32
    %c0_38 = arith.constant 0 : index
    %38 = arith.index_cast %37 : i32 to index
    %c1_39 = arith.constant 1 : index
    %c0_40 = arith.constant 0 : index
    %39 = vector.load %arg3[%c0_38, %38, %c1_39, %c0_40] : memref<1x18x18x4xbf16, #tpu.memory_space<vmem>>, vector<1x8x16x4xbf16>
    %40 = vector.shape_cast %39 : vector<1x8x16x4xbf16> to vector<8x16x4xbf16>
    %c0_41 = arith.constant 0 : index
    %c0_42 = arith.constant 0 : index
    %c28 = arith.constant 28 : index
    %41 = vector.load %arg8[%c0_41, %c0_42, %c28] : memref<8x16x36xbf16, #tpu.memory_space<vmem>>, vector<8x16x4xbf16>
    tpu.vector_store %arg8[%c0_41, %c0_42, %c28], %40 {strides = array<i32>} : memref<8x16x36xbf16, #tpu.memory_space<vmem>>, vector<8x16x4xbf16>,
    %c2_i32_43 = arith.constant 2 : i32
    %42 = arith.addi %1, %c2_i32_43 : i32
    %c0_44 = arith.constant 0 : index
    %43 = arith.index_cast %42 : i32 to index
    %c2_45 = arith.constant 2 : index
    %c0_46 = arith.constant 0 : index
    %44 = vector.load %arg3[%c0_44, %43, %c2_45, %c0_46] : memref<1x18x18x4xbf16, #tpu.memory_space<vmem>>, vector<1x8x16x4xbf16>
    %45 = vector.shape_cast %44 : vector<1x8x16x4xbf16> to vector<8x16x4xbf16>
    %c0_47 = arith.constant 0 : index
    %c0_48 = arith.constant 0 : index
    %c32 = arith.constant 32 : index
    %46 = vector.load %arg8[%c0_47, %c0_48, %c32] : memref<8x16x36xbf16, #tpu.memory_space<vmem>>, vector<8x16x4xbf16>
    tpu.vector_store %arg8[%c0_47, %c0_48, %c32], %45 {strides = array<i32>} : memref<8x16x36xbf16, #tpu.memory_space<vmem>>, vector<8x16x4xbf16>,
    %c0_49 = arith.constant 0 : index
    %c0_50 = arith.constant 0 : index
    %c0_51 = arith.constant 0 : index
    %47 = vector.load %arg8[%c0_49, %c0_50, %c0_51] : memref<8x16x36xbf16, #tpu.memory_space<vmem>>, vector<8x16x36xbf16>
    %48 = vector.shape_cast %47 : vector<8x16x36xbf16> to vector<128x36xbf16>
    %c0_52 = arith.constant 0 : index
    %c0_53 = arith.constant 0 : index
    %49 = vector.load %arg4[%c0_52, %c0_53] : memref<36x128xbf16, #tpu.memory_space<vmem>>, vector<36x128xbf16>
    %cst = arith.constant dense<0.000000e+00> : vector<128x128xf32>
    %50 = tpu.matmul %48, %49, %cst {dimension_numbers = #tpu.dot_dimension_numbers<[1], [0], [0], [1], [0, 0, 1, 1], [], []>} : vector<128x36xbf16>, vector<36x128xbf16>, vector<128x128xf32> -> vector<128x128xf32>
    %c0_54 = arith.constant 0 : index
    %c0_55 = arith.constant 0 : index
    %51 = vector.load %arg5[%c0_54, %c0_55] : memref<1x128xf32, #tpu.memory_space<vmem>>, vector<1x128xf32>
    %52 = vector.broadcast %51 : vector<1x128xf32> to vector<128x128xf32>
    %53 = arith.mulf %50, %52 : vector<128x128xf32>
    %c0_56 = arith.constant 0 : index
    %c0_57 = arith.constant 0 : index
    %54 = vector.load %arg6[%c0_56, %c0_57] : memref<1x128xf32, #tpu.memory_space<vmem>>, vector<1x128xf32>
    %55 = vector.broadcast %54 : vector<1x128xf32> to vector<128x128xf32>
    %56 = arith.addf %53, %55 : vector<128x128xf32>
    %cst_58 = arith.constant 0.000000e+00 : f32
    %57 = vector.broadcast %cst_58 : f32 to vector<128x128xf32>
    %58 = arith.maximumf %56, %57 : vector<128x128xf32>
    %59 = vector.shape_cast %58 : vector<128x128xf32> to vector<1x8x16x128xf32>
    %60 = arith.truncf %59 : vector<1x8x16x128xf32> to vector<1x8x16x128xbf16>
    %c0_59 = arith.constant 0 : index
    %c0_60 = arith.constant 0 : index
    %c0_61 = arith.constant 0 : index
    %c0_62 = arith.constant 0 : index
    %61 = vector.load %arg7[%c0_59, %c0_60, %c0_61, %c0_62] : memref<1x8x16x128xbf16, #tpu.memory_space<vmem>>, vector<1x8x16x128xbf16>
    tpu.vector_store %arg7[%c0_59, %c0_60, %c0_61, %c0_62], %60 {strides = array<i32>} : memref<1x8x16x128xbf16, #tpu.memory_space<vmem>>, vector<1x8x16x128xbf16>,
    return
  }
  func.func @transform_0(%arg0: i32, %arg1: i32, %arg2: i32) -> (i32, i32, i32, i32) {
    %c0_i32 = arith.constant 0 : i32
    %c0_i32_0 = arith.constant 0 : i32
    %c0_i32_1 = arith.constant 0 : i32
    %c0_i32_2 = arith.constant 0 : i32
    return %arg0, %c0_i32, %c0_i32_0, %c0_i32_1 : i32, i32, i32, i32
  }
  func.func @transform_1(%arg0: i32, %arg1: i32, %arg2: i32) -> (i32, i32) {
    %c0_i32 = arith.constant 0 : i32
    %c0_i32_0 = arith.constant 0 : i32
    return %c0_i32, %arg1 : i32, i32
  }
  func.func @transform_2(%arg0: i32, %arg1: i32, %arg2: i32) -> (i32, i32) {
    %c0_i32 = arith.constant 0 : i32
    %c0_i32_0 = arith.constant 0 : i32
    return %c0_i32, %arg1 : i32, i32
  }
  func.func @transform_3(%arg0: i32, %arg1: i32, %arg2: i32) -> (i32, i32) {
    %c0_i32 = arith.constant 0 : i32
    %c0_i32_0 = arith.constant 0 : i32
    return %c0_i32, %arg1 : i32, i32
  }
  func.func @transform_4(%arg0: i32, %arg1: i32, %arg2: i32) -> (i32, i32, i32, i32) {
    %c0_i32 = arith.constant 0 : i32
    %c0_i32_0 = arith.constant 0 : i32
    return %arg0, %arg2, %c0_i32, %arg1 : i32, i32, i32, i32
  }
}

</mosaic_0001>

<llo_original>
// kernel: tpu_custom_call.1
$region0: #{tpu_custom_call.1}
  #allocation0 [shape = 'u32[]', space=smem, size = 0x4, offset = 0x4, fixed_abs, tag = 'smem constant byte address 0x4 - core index']
  #allocation1 [shape = 'u32[144,128]{1,0:T(1,128)}', space=vmem, size = 0x12000, scoped, tag = 'internal scratch']
  #allocation2 [shape = 'bf16[8,16,36]{2,1,0:T(8,128)(2,1)}', space=vmem, size = 0x8000, scoped, tag = 'scratch operand']
  %s0 = inlined_call_operand.vmem [shape: bf16[2,18,18,4], index: 0, kind: input, shape index: {}]
  %s1 = inlined_call_operand.vmem [shape: bf16[36,128], index: 1, kind: input, shape index: {}]
  %s2 = inlined_call_operand.vmem [shape: f32[1,128], index: 2, kind: input, shape index: {}]
  %s3 = inlined_call_operand.vmem [shape: f32[1,128], index: 3, kind: input, shape index: {}]
  %s4 = inlined_call_operand.hbm [shape: bf16[2,16,16,128], index: 4, kind: output, shape index: {}]
  %s5 = sld [smem:[#allocation0]]
  $region49: #{tpu_custom_call.1} parent=0
    _
  %s7 = ssub.s32 1, %s5
  %s8 = scalar_select 0, %s7, %s5
  $region1: #{tpu_custom_call.1} parent=0
    #allocation3 [shape = 'u8[65536]{0}', space=vmem, size = 0x10000, scoped, tag = 'output window, operand 0']
    #allocation4 [shape = 's32[2]{0}', space=sflag, size = 0x8, scoped, tag = 'scoped memory for tpu_custom_call.1']
    %9 = vsyncpa [#allocation4], 0
    %s10 = scalar_lea.sflag [#allocation4], 1
    %11 = vsyncpa %s10, 0
    loop: start=0, step=1, limit=6
    $region2: #{tpu_custom_call.1} parent=1 // loop_pre_header
      _
    $region3: #{tpu_custom_call.1} parent=1 // loop_header
      %s13 = sphi 0, %s17
      %p14 = scmp.ge.s32.totalorder %s13, 6
      %s20 = sphi 0, %s39
      %s21 = sphi 0, %s35
      %s22 = sphi 0, %s31
      %s23 = sphi 0, %s20
      %s24 = sphi 0, %s21
      %s25 = sphi 0, %s22
      %s26 = sphi 0, %s23
      %s27 = sphi 0, %s24
      %s28 = sphi 0, %s25
      %s42 = sphi 0, %s44
      %s45 = sphi 0, %s42
      %s46 = sphi 0, %s45
      %s62 = sphi 0, %s46
      %s68 = sphi 0, %s70
      %s71 = sphi 0, %s68
      %s72 = sphi 0, %s71
      %s88 = sphi 0, %s72
      %s94 = sphi 0, %s96
      %s97 = sphi 0, %s94
      %s98 = sphi 0, %s97
      %s114 = sphi 0, %s98
      %s120 = sphi 0, %s122
      %s123 = sphi 0, %s120
      %s124 = sphi 0, %s123
      %s140 = sphi 0, %s124
      %s150 = sphi 0, %s152
      %s153 = sphi 0, %s150
      %s154 = sphi 0, %s153
      %s170 = sphi 0, %s154
    $region4: #{tpu_custom_call.1} parent=1 // loop_header_branch
      %16 = sbr.rel (%p14) target = $region8
    $region5: #{tpu_custom_call.1} parent=1 // loop_body
      %s18 = ssub.s32 %s13, 1
      %s19 = ssub.s32 %s13, 2
      %s29 = sadd.s32 1, %s22
      %p30 = scmp.ge.s32.totalorder %s29, 2
      %s31 = scalar_select %p30, 0, %s29
      %s32 = sadd.s32 1, %s21
      %s33 = scalar_select %p30, %s32, %s21
      %p34 = scmp.ge.s32.totalorder %s33, 1
      %s35 = scalar_select %p34, 0, %s33
      %s36 = sadd.s32 1, %s20
      %s37 = scalar_select %p34, %s36, %s20
      %p38 = scmp.ge.s32.totalorder %s37, 2
      %s39 = scalar_select %p38, 0, %s37
      %s40 = ssub.s32 %s20, %s39
      %p41 = scmp.eq.s32.totalorder %s40, 0
      %s43 = sadd.s32 %s42, 1
      %s44 = scalar_select %p41, %s42, %s43
      %p47 = pneg %p41
      %p48 = scmp.eq.s32.totalorder %s13, 3
      %p49 = por %p47, %p48
      %p50 = scmp.ne.s32.totalorder %s42, %s45
      %p51 = scmp.eq.s32.totalorder %s13, 0
      %p52 = por %p50, %p51
      %p53 = scmp.ne.s32.totalorder %s42, %s45
      %p54 = scmp.eq.s32.totalorder %s18, 3
      %p55 = por %p53, %p54
      %p56 = scmp.ne.s32.totalorder %s45, %s46
      %p57 = scmp.eq.s32.totalorder %s18, 0
      %p58 = por %p56, %p57
      %p59 = scmp.ne.s32.totalorder %s45, %s46
      %p60 = scmp.eq.s32.totalorder %s19, 3
      %p61 = por %p59, %p60
      %p63 = scmp.ne.s32.totalorder %s46, %s62
      %p64 = scmp.eq.s32.totalorder %s19, 0
      %p65 = por %p63, %p64
      %s66 = ssub.s32 %s21, %s35
      %p67 = scmp.eq.s32.totalorder %s66, 0
      %s69 = sadd.s32 %s68, 1
      %s70 = scalar_select %p67, %s68, %s69
      %p73 = pneg %p67
      %p74 = scmp.eq.s32.totalorder %s13, 3
      %p75 = por %p73, %p74
      %p76 = scmp.ne.s32.totalorder %s68, %s71
      %p77 = scmp.eq.s32.totalorder %s13, 0
      %p78 = por %p76, %p77
      %p79 = scmp.ne.s32.totalorder %s68, %s71
      %p80 = scmp.eq.s32.totalorder %s18, 3
      %p81 = por %p79, %p80
      %p82 = scmp.ne.s32.totalorder %s71, %s72
      %p83 = scmp.eq.s32.totalorder %s18, 0
      %p84 = por %p82, %p83
      %p85 = scmp.ne.s32.totalorder %s71, %s72
      %p86 = scmp.eq.s32.totalorder %s19, 3
      %p87 = por %p85, %p86
      %p89 = scmp.ne.s32.totalorder %s72, %s88
      %p90 = scmp.eq.s32.totalorder %s19, 0
      %p91 = por %p89, %p90
      %s92 = ssub.s32 %s21, %s35
      %p93 = scmp.eq.s32.totalorder %s92, 0
      %s95 = sadd.s32 %s94, 1
      %s96 = scalar_select %p93, %s94, %s95
      %p99 = pneg %p93
      %p100 = scmp.eq.s32.totalorder %s13, 3
      %p101 = por %p99, %p100
      %p102 = scmp.ne.s32.totalorder %s94, %s97
      %p103 = scmp.eq.s32.totalorder %s13, 0
      %p104 = por %p102, %p103
      %p105 = scmp.ne.s32.totalorder %s94, %s97
      %p106 = scmp.eq.s32.totalorder %s18, 3
      %p107 = por %p105, %p106
      %p108 = scmp.ne.s32.totalorder %s97, %s98
      %p109 = scmp.eq.s32.totalorder %s18, 0
      %p110 = por %p108, %p109
      %p111 = scmp.ne.s32.totalorder %s97, %s98
      %p112 = scmp.eq.s32.totalorder %s19, 3
      %p113 = por %p111, %p112
      %p115 = scmp.ne.s32.totalorder %s98, %s114
      %p116 = scmp.eq.s32.totalorder %s19, 0
      %p117 = por %p115, %p116
      %s118 = ssub.s32 %s21, %s35
      %p119 = scmp.eq.s32.totalorder %s118, 0
      %s121 = sadd.s32 %s120, 1
      %s122 = scalar_select %p119, %s120, %s121
      %p125 = pneg %p119
      %p126 = scmp.eq.s32.totalorder %s13, 3
      %p127 = por %p125, %p126
      %p128 = scmp.ne.s32.totalorder %s120, %s123
      %p129 = scmp.eq.s32.totalorder %s13, 0
      %p130 = por %p128, %p129
      %p131 = scmp.ne.s32.totalorder %s120, %s123
      %p132 = scmp.eq.s32.totalorder %s18, 3
      %p133 = por %p131, %p132
      %p134 = scmp.ne.s32.totalorder %s123, %s124
      %p135 = scmp.eq.s32.totalorder %s18, 0
      %p136 = por %p134, %p135
      %p137 = scmp.ne.s32.totalorder %s123, %s124
      %p138 = scmp.eq.s32.totalorder %s19, 3
      %p139 = por %p137, %p138
      %p141 = scmp.ne.s32.totalorder %s124, %s140
      %p142 = scmp.eq.s32.totalorder %s19, 0
      %p143 = por %p141, %p142
      %s144 = ssub.s32 %s20, %s39
      %s145 = ssub.s32 %s22, %s31
      %s146 = sor.u32 %s144, %s145
      %s147 = ssub.s32 %s21, %s35
      %s148 = sor.u32 %s146, %s147
      %p149 = scmp.eq.s32.totalorder %s148, 0
      %s151 = sadd.s32 %s150, 1
      %s152 = scalar_select %p149, %s150, %s151
      %p155 = pneg %p149
      %p156 = scmp.eq.s32.totalorder %s13, 3
      %p157 = por %p155, %p156
      %p158 = scmp.ne.s32.totalorder %s150, %s153
      %p159 = scmp.eq.s32.totalorder %s13, 0
      %p160 = por %p158, %p159
      %p161 = scmp.ne.s32.totalorder %s150, %s153
      %p162 = scmp.eq.s32.totalorder %s18, 3
      %p163 = por %p161, %p162
      %p164 = scmp.ne.s32.totalorder %s153, %s154
      %p165 = scmp.eq.s32.totalorder %s18, 0
      %p166 = por %p164, %p165
      %p167 = scmp.ne.s32.totalorder %s153, %s154
      %p168 = scmp.eq.s32.totalorder %s19, 3
      %p169 = por %p167, %p168
      %p171 = scmp.ne.s32.totalorder %s154, %s170
      %p172 = scmp.eq.s32.totalorder %s19, 0
      %p173 = por %p171, %p172
      %p174 = scmp.le.s32.totalorder 1, %s13
      %p175 = scmp.lt.s32.totalorder %s13, 5
      %p176 = pnand %p174, %p175
      %p177 = pneg %p176
      // Predicated region
      $region9: #{tpu_custom_call.1} parent=5 // pred_check
        _
      $region10: #{tpu_custom_call.1} parent=5 // pred_check_branch
        %179 = sbr.rel (%p176) target = $region12
      $region11: #{tpu_custom_call.1} parent=5 // pred_region
        %s180 = ssub.s32 %s13, 1
        // Predicated region
        $region13: #{tpu_custom_call.1} parent=11 // pred_check
          %p181 = pneg %p84
        $region14: #{tpu_custom_call.1} parent=11 // pred_check_branch
          %183 = sbr.rel (%p181) target = $region16
        $region15: #{tpu_custom_call.1} parent=11 // pred_region
          %p184 = scmp.lt.s32.totalorder %s24, 0
          %s185 = scalar_select %p184, %s24, 0
          %s186 = smul.addr %s185, 4
          %s187 = scalar_lea.vmem %s1, %s186
        $region16: #{tpu_custom_call.1} parent=11 // pred_fallthru
          _
        // Predicated region
        $region17: #{tpu_custom_call.1} parent=11 // pred_check
          %p188 = pneg %p110
        $region18: #{tpu_custom_call.1} parent=11 // pred_check_branch
          %190 = sbr.rel (%p188) target = $region20
        $region19: #{tpu_custom_call.1} parent=11 // pred_region
          %p191 = scmp.lt.s32.totalorder %s24, 0
          %s192 = scalar_select %p191, %s24, 0
          %s193 = scalar_lea.vmem %s2, %s192
        $region20: #{tpu_custom_call.1} parent=11 // pred_fallthru
          _
        // Predicated region
        $region21: #{tpu_custom_call.1} parent=11 // pred_check
          %p194 = pneg %p136
        $region22: #{tpu_custom_call.1} parent=11 // pred_check_branch
          %196 = sbr.rel (%p194) target = $region24
        $region23: #{tpu_custom_call.1} parent=11 // pred_region
          %p197 = scmp.lt.s32.totalorder %s24, 0
          %s198 = scalar_select %p197, %s24, 0
          %s199 = scalar_lea.vmem %s3, %s198
        $region24: #{tpu_custom_call.1} parent=11 // pred_fallthru
          _
      $region12: #{tpu_custom_call.1} parent=5 // pred_fallthru
        _
      %p200 = scmp.lt.s32.totalorder %s13, 4
      // Predicated region
      $region25: #{tpu_custom_call.1} parent=5 // pred_check
        %p201 = pneg %p200
      $region26: #{tpu_custom_call.1} parent=5 // pred_check_branch
        %203 = sbr.rel (%p201) target = $region28
      $region27: #{tpu_custom_call.1} parent=5 // pred_region
        // Predicated region
        $region29: #{tpu_custom_call.1} parent=27 // pred_check
          %p204 = pneg %p52
        $region30: #{tpu_custom_call.1} parent=27 // pred_check_branch
          %206 = sbr.rel (%p204) target = $region32
        $region31: #{tpu_custom_call.1} parent=27 // pred_region
          %p207 = scmp.lt.s32.totalorder %s20, 1
          %s208 = scalar_select %p207, %s20, 1
          %s209 = smul.addr %s208, 54
          %s210 = smul.addr %s209, 4
          %s211 = scalar_lea.vmem %s0, %s210
        $region32: #{tpu_custom_call.1} parent=27 // pred_fallthru
          _
      $region28: #{tpu_custom_call.1} parent=5 // pred_fallthru
        _
      %p212 = scmp.le.s32.totalorder 1, %s13
      %p213 = scmp.lt.s32.totalorder %s13, 5
      %p214 = pnand %p212, %p213
      %p215 = pneg %p214
      // Predicated region
      $region33: #{tpu_custom_call.1} parent=5 // pred_check
        _
      $region34: #{tpu_custom_call.1} parent=5 // pred_check_branch
        %217 = sbr.rel (%p214) target = $region36
      $region35: #{tpu_custom_call.1} parent=5 // pred_region
        %s218 = ssub.s32 %s13, 1
        %p219 = scmp.lt.s32.totalorder %s23, 1
        %s220 = scalar_select %p219, %s23, 1
        %s221 = smul.addr %s220, 54
        %s222 = smul.addr %s221, 4
        %s223 = scalar_lea.vmem %s0, %s222
        %p224 = pneg %p58
        %p225 = pneg %p55
        %p226 = scmp.lt.s32.totalorder %s24, 0
        %s227 = scalar_select %p226, %s24, 0
        %s228 = smul.addr %s227, 4
        %s229 = scalar_lea.vmem %s1, %s228
        %p230 = pneg %p84
        %p231 = pneg %p81
        %p232 = scmp.lt.s32.totalorder %s24, 0
        %s233 = scalar_select %p232, %s24, 0
        %s234 = scalar_lea.vmem %s2, %s233
        %p235 = pneg %p110
        %p236 = pneg %p107
        %p237 = scmp.lt.s32.totalorder %s24, 0
        %s238 = scalar_select %p237, %s24, 0
        %s239 = scalar_lea.vmem %s3, %s238
        %p240 = pneg %p136
        %p241 = pneg %p133
        %p242 = pneg %p166
        %p243 = pneg %p163
        %s244 = sand.u32 %s153, 1
        %s245 = scalar_lea.sflag [#allocation4], %s244
        %s246 = sand.u32 %s153, 1
        %s247 = smul.addr %s246, 64
        %s248 = scalar_lea.vmem [#allocation3], %s247
        %p249 = scmp.lt.s32.totalorder %s23, 1
        %s250 = scalar_select %p249, %s23, 1
        %s251 = smul.addr %s250, 54
        %s252 = smul.addr %s251, 4
        %s253 = scalar_lea.vmem %s0, %s252
        %p254 = scmp.lt.s32.totalorder %s24, 0
        %s255 = scalar_select %p254, %s24, 0
        %s256 = smul.addr %s255, 4
        %s257 = scalar_lea.vmem %s1, %s256
        %p258 = scmp.lt.s32.totalorder %s24, 0
        %s259 = scalar_select %p258, %s24, 0
        %s260 = scalar_lea.vmem %s2, %s259
        %p261 = scmp.lt.s32.totalorder %s24, 0
        %s262 = scalar_select %p261, %s24, 0
        %s263 = scalar_lea.vmem %s3, %s262
        %s264 = smul.u32 8, %s25
        %s266 = smul.u32 %s25, 8
        %s267 = smul.u32 %s266, 3
        %s268 = smul.addr %s267, 4
        %s269 = scalar_lea.vmem %s253, %s268
        %v270 = vld [vmem:[%s269] sm:$0xf]
        %v271 = vld [vmem:[%s269 + $0x4] sm:$0xf]
        %v272 = vld [vmem:[%s269 + $0xc] sm:$0xf]
        %v273 = vld [vmem:[%s269 + $0x10] sm:$0xf]
        %v274 = vld [vmem:[%s269 + $0x18] sm:$0xf]
        %v275 = vld [vmem:[%s269 + $0x1c] sm:$0xf]
        %v276 = vld [vmem:[%s269 + $0x24] sm:$0xf]
        %v277 = vld [vmem:[%s269 + $0x28] sm:$0xf]
        %v278 = vld [vmem:[%s269 + $0x30] sm:$0xf]
        %v279 = vld [vmem:[%s269 + $0x34] sm:$0xf]
        %v280 = vld [vmem:[%s269 + $0x3c] sm:$0xf]
        %v281 = vld [vmem:[%s269 + $0x40] sm:$0xf]
        %v282 = vld [vmem:[%s269 + $0x48] sm:$0xf]
        %v283 = vld [vmem:[%s269 + $0x4c] sm:$0xf]
        %v284 = vld [vmem:[%s269 + $0x54] sm:$0xf]
        %v285 = vld [vmem:[%s269 + $0x58] sm:$0xf]
        %vm286 = vcmask 27648
        %287 = vst.msk [vmem:[#allocation2] sm:$0xf] %vm286, %v270
        %288 = vst.msk [vmem:[#allocation2 + $0x4] sm:$0xf] %vm286, %v271
        %289 = vst.msk [vmem:[#allocation2 + $0x8] sm:$0xf] %vm286, %v272
        %290 = vst.msk [vmem:[#allocation2 + $0xc] sm:$0xf] %vm286, %v273
        %291 = vst.msk [vmem:[#allocation2 + $0x10] sm:$0xf] %vm286, %v274
        %292 = vst.msk [vmem:[#allocation2 + $0x14] sm:$0xf] %vm286, %v275
        %293 = vst.msk [vmem:[#allocation2 + $0x18] sm:$0xf] %vm286, %v276
        %294 = vst.msk [vmem:[#allocation2 + $0x1c] sm:$0xf] %vm286, %v277
        %295 = vst.msk [vmem:[#allocation2 + $0x20] sm:$0xf] %vm286, %v278
        %296 = vst.msk [vmem:[#allocation2 + $0x24] sm:$0xf] %vm286, %v279
        %297 = vst.msk [vmem:[#allocation2 + $0x28] sm:$0xf] %vm286, %v280
        %298 = vst.msk [vmem:[#allocation2 + $0x2c] sm:$0xf] %vm286, %v281
        %299 = vst.msk [vmem:[#allocation2 + $0x30] sm:$0xf] %vm286, %v282
        %300 = vst.msk [vmem:[#allocation2 + $0x34] sm:$0xf] %vm286, %v283
        %301 = vst.msk [vmem:[#allocation2 + $0x38] sm:$0xf] %vm286, %v284
        %302 = vst.msk [vmem:[#allocation2 + $0x3c] sm:$0xf] %vm286, %v285
        %v303 = vld [vmem:[%s269] sm:$0xf]
        %v304 = vld [vmem:[%s269 + $0x4] sm:$0xf]
        %v305 = vld [vmem:[%s269 + $0x8] sm:$0x1]
        %v306 = vld [vmem:[%s269 + $0xc] sm:$0xf]
        %v307 = vld [vmem:[%s269 + $0x10] sm:$0xf]
        %v308 = vld [vmem:[%s269 + $0x14] sm:$0x1]
        %v309 = vld [vmem:[%s269 + $0x18] sm:$0xf]
        %v310 = vld [vmem:[%s269 + $0x1c] sm:$0xf]
        %v311 = vld [vmem:[%s269 + $0x20] sm:$0x1]
        %v312 = vld [vmem:[%s269 + $0x24] sm:$0xf]
        %v313 = vld [vmem:[%s269 + $0x28] sm:$0xf]
        %v314 = vld [vmem:[%s269 + $0x2c] sm:$0x1]
        %v315 = vld [vmem:[%s269 + $0x30] sm:$0xf]
        %v316 = vld [vmem:[%s269 + $0x34] sm:$0xf]
        %v317 = vld [vmem:[%s269 + $0x38] sm:$0x1]
        %v318 = vld [vmem:[%s269 + $0x3c] sm:$0xf]
        %v319 = vld [vmem:[%s269 + $0x40] sm:$0xf]
        %v320 = vld [vmem:[%s269 + $0x44] sm:$0x1]
        %v321 = vld [vmem:[%s269 + $0x48] sm:$0xf]
        %v322 = vld [vmem:[%s269 + $0x4c] sm:$0xf]
        %v323 = vld [vmem:[%s269 + $0x50] sm:$0x1]
        %v324 = vld [vmem:[%s269 + $0x54] sm:$0xf]
        %v325 = vld [vmem:[%s269 + $0x58] sm:$0xf]
        %v326 = vld [vmem:[%s269 + $0x5c] sm:$0x1]
        %vm327 = vsmask.f32 3328
        %vm328 = vsmask.f32 7440
        %vm329 = vmor %vm327, %vm328
        %v331 = vshrl.u32 %v303, 16
        %v333 = vrot.slane %v331, 4
        %v334 = vshll.u32 %v303, 16
        %v336 = vrot.slane %v334, 5
        %v337 = vor.u32 %v333, %v336
        %v338 = vrot.slane %v337, 4
        %v340 = vshll.u32 %v304, 16
        %v342 = vrot.slane %v340, 5
        %v343 = vsel %vm329, %v338, %v342
        %v344 = vshrl.u32 %v304, 16
        %v346 = vrot.slane %v344, 4
        %v347 = vor.u32 %v346, %v342
        %v348 = vrot.slane %v347, 4
        %v350 = vshll.u32 %v305, 16
        %v352 = vrot.slane %v350, 5
        %v353 = vsel %vm329, %v348, %v352
        %v355 = vshrl.u32 %v306, 16
        %v357 = vrot.slane %v355, 4
        %v358 = vshll.u32 %v306, 16
        %v360 = vrot.slane %v358, 5
        %v361 = vor.u32 %v357, %v360
        %v362 = vrot.slane %v361, 4
        %v364 = vshll.u32 %v307, 16
        %v366 = vrot.slane %v364, 5
        %v367 = vsel %vm329, %v362, %v366
        %v368 = vshrl.u32 %v307, 16
        %v370 = vrot.slane %v368, 4
        %v371 = vor.u32 %v370, %v366
        %v372 = vrot.slane %v371, 4
        %v374 = vshll.u32 %v308, 16
        %v376 = vrot.slane %v374, 5
        %v377 = vsel %vm329, %v372, %v376
        %v379 = vshrl.u32 %v309, 16
        %v381 = vrot.slane %v379, 4
        %v382 = vshll.u32 %v309, 16
        %v384 = vrot.slane %v382, 5
        %v385 = vor.u32 %v381, %v384
        %v386 = vrot.slane %v385, 4
        %v388 = vshll.u32 %v310, 16
        %v390 = vrot.slane %v388, 5
        %v391 = vsel %vm329, %v386, %v390
        %v392 = vshrl.u32 %v310, 16
        %v394 = vrot.slane %v392, 4
        %v395 = vor.u32 %v394, %v390
        %v396 = vrot.slane %v395, 4
        %v398 = vshll.u32 %v311, 16
        %v400 = vrot.slane %v398, 5
        %v401 = vsel %vm329, %v396, %v400
        %v403 = vshrl.u32 %v312, 16
        %v405 = vrot.slane %v403, 4
        %v406 = vshll.u32 %v312, 16
        %v408 = vrot.slane %v406, 5
        %v409 = vor.u32 %v405, %v408
        %v410 = vrot.slane %v409, 4
        %v412 = vshll.u32 %v313, 16
        %v414 = vrot.slane %v412, 5
        %v415 = vsel %vm329, %v410, %v414
        %v416 = vshrl.u32 %v313, 16
        %v418 = vrot.slane %v416, 4
        %v419 = vor.u32 %v418, %v414
        %v420 = vrot.slane %v419, 4
        %v422 = vshll.u32 %v314, 16
        %v424 = vrot.slane %v422, 5
        %v425 = vsel %vm329, %v420, %v424
        %v427 = vshrl.u32 %v315, 16
        %v429 = vrot.slane %v427, 4
        %v430 = vshll.u32 %v315, 16
        %v432 = vrot.slane %v430, 5
        %v433 = vor.u32 %v429, %v432
        %v434 = vrot.slane %v433, 4
        %v436 = vshll.u32 %v316, 16
        %v438 = vrot.slane %v436, 5
        %v439 = vsel %vm329, %v434, %v438
        %v440 = vshrl.u32 %v316, 16
        %v442 = vrot.slane %v440, 4
        %v443 = vor.u32 %v442, %v438
        %v444 = vrot.slane %v443, 4
        %v446 = vshll.u32 %v317, 16
        %v448 = vrot.slane %v446, 5
        %v449 = vsel %vm329, %v444, %v448
        %v451 = vshrl.u32 %v318, 16
        %v453 = vrot.slane %v451, 4
        %v454 = vshll.u32 %v318, 16
        %v456 = vrot.slane %v454, 5
        %v457 = vor.u32 %v453, %v456
        %v458 = vrot.slane %v457, 4
        %v460 = vshll.u32 %v319, 16
        %v462 = vrot.slane %v460, 5
        %v463 = vsel %vm329, %v458, %v462
        %v464 = vshrl.u32 %v319, 16
        %v466 = vrot.slane %v464, 4
        %v467 = vor.u32 %v466, %v462
        %v468 = vrot.slane %v467, 4
        %v470 = vshll.u32 %v320, 16
        %v472 = vrot.slane %v470, 5
        %v473 = vsel %vm329, %v468, %v472
        %v475 = vshrl.u32 %v321, 16
        %v477 = vrot.slane %v475, 4
        %v478 = vshll.u32 %v321, 16
        %v480 = vrot.slane %v478, 5
        %v481 = vor.u32 %v477, %v480
        %v482 = vrot.slane %v481, 4
        %v484 = vshll.u32 %v322, 16
        %v486 = vrot.slane %v484, 5
        %v487 = vsel %vm329, %v482, %v486
        %v488 = vshrl.u32 %v322, 16
        %v490 = vrot.slane %v488, 4
        %v491 = vor.u32 %v490, %v486
        %v492 = vrot.slane %v491, 4
        %v494 = vshll.u32 %v323, 16
        %v496 = vrot.slane %v494, 5
        %v497 = vsel %vm329, %v492, %v496
        %v499 = vshrl.u32 %v324, 16
        %v501 = vrot.slane %v499, 4
        %v502 = vshll.u32 %v324, 16
        %v504 = vrot.slane %v502, 5
        %v505 = vor.u32 %v501, %v504
        %v506 = vrot.slane %v505, 4
        %v508 = vshll.u32 %v325, 16
        %v510 = vrot.slane %v508, 5
        %v511 = vsel %vm329, %v506, %v510
        %v512 = vshrl.u32 %v325, 16
        %v514 = vrot.slane %v512, 4
        %v515 = vor.u32 %v514, %v510
        %v516 = vrot.slane %v515, 4
        %v518 = vshll.u32 %v326, 16
        %v520 = vrot.slane %v518, 5
        %v521 = vsel %vm329, %v516, %v520
        %522 = vrot.lane.b32.xlu0 %v343, 4
        %v523 = vpop.permute.xlu0 %522
        %524 = vrot.lane.b32.xlu0 %v353, 4
        %v525 = vpop.permute.xlu0 %524
        %526 = vrot.lane.b32.xlu0 %v367, 4
        %v527 = vpop.permute.xlu0 %526
        %528 = vrot.lane.b32.xlu0 %v377, 4
        %v529 = vpop.permute.xlu0 %528
        %530 = vrot.lane.b32.xlu0 %v391, 4
        %v531 = vpop.permute.xlu0 %530
        %532 = vrot.lane.b32.xlu0 %v401, 4
        %v533 = vpop.permute.xlu0 %532
        %534 = vrot.lane.b32.xlu0 %v415, 4
        %v535 = vpop.permute.xlu0 %534
        %536 = vrot.lane.b32.xlu0 %v425, 4
        %v537 = vpop.permute.xlu0 %536
        %538 = vrot.lane.b32.xlu0 %v439, 4
        %v539 = vpop.permute.xlu0 %538
        %540 = vrot.lane.b32.xlu0 %v449, 4
        %v541 = vpop.permute.xlu0 %540
        %542 = vrot.lane.b32.xlu0 %v463, 4
        %v543 = vpop.permute.xlu0 %542
        %544 = vrot.lane.b32.xlu0 %v473, 4
        %v545 = vpop.permute.xlu0 %544
        %546 = vrot.lane.b32.xlu0 %v487, 4
        %v547 = vpop.permute.xlu0 %546
        %548 = vrot.lane.b32.xlu0 %v497, 4
        %v549 = vpop.permute.xlu0 %548
        %550 = vrot.lane.b32.xlu0 %v511, 4
        %v551 = vpop.permute.xlu0 %550
        %552 = vrot.lane.b32.xlu0 %v521, 4
        %v553 = vpop.permute.xlu0 %552
        %vm570 = vcmask 60448
        %571 = vst.msk [vmem:[#allocation2] sm:$0xf] %vm570, %v523
        %572 = vst.msk [vmem:[#allocation2 + $0x4] sm:$0xf] %vm570, %v525
        %573 = vst.msk [vmem:[#allocation2 + $0x8] sm:$0xf] %vm570, %v527
        %574 = vst.msk [vmem:[#allocation2 + $0xc] sm:$0xf] %vm570, %v529
        %575 = vst.msk [vmem:[#allocation2 + $0x10] sm:$0xf] %vm570, %v531
        %576 = vst.msk [vmem:[#allocation2 + $0x14] sm:$0xf] %vm570, %v533
        %577 = vst.msk [vmem:[#allocation2 + $0x18] sm:$0xf] %vm570, %v535
        %578 = vst.msk [vmem:[#allocation2 + $0x1c] sm:$0xf] %vm570, %v537
        %579 = vst.msk [vmem:[#allocation2 + $0x20] sm:$0xf] %vm570, %v539
        %580 = vst.msk [vmem:[#allocation2 + $0x24] sm:$0xf] %vm570, %v541
        %581 = vst.msk [vmem:[#allocation2 + $0x28] sm:$0xf] %vm570, %v543
        %582 = vst.msk [vmem:[#allocation2 + $0x2c] sm:$0xf] %vm570, %v545
        %583 = vst.msk [vmem:[#allocation2 + $0x30] sm:$0xf] %vm570, %v547
        %584 = vst.msk [vmem:[#allocation2 + $0x34] sm:$0xf] %vm570, %v549
        %585 = vst.msk [vmem:[#allocation2 + $0x38] sm:$0xf] %vm570, %v551
        %586 = vst.msk [vmem:[#allocation2 + $0x3c] sm:$0xf] %vm570, %v553
        %v587 = vld [vmem:[%s269] sm:$0xe]
        %v588 = vld [vmem:[%s269 + $0x4] sm:$0xf]
        %v589 = vld [vmem:[%s269 + $0x8] sm:$0x1]
        %v590 = vld [vmem:[%s269 + $0xc] sm:$0xe]
        %v591 = vld [vmem:[%s269 + $0x10] sm:$0xf]
        %v592 = vld [vmem:[%s269 + $0x14] sm:$0x1]
        %v593 = vld [vmem:[%s269 + $0x18] sm:$0xe]
        %v594 = vld [vmem:[%s269 + $0x1c] sm:$0xf]
        %v595 = vld [vmem:[%s269 + $0x20] sm:$0x1]
        %v596 = vld [vmem:[%s269 + $0x24] sm:$0xe]
        %v597 = vld [vmem:[%s269 + $0x28] sm:$0xf]
        %v598 = vld [vmem:[%s269 + $0x2c] sm:$0x1]
        %v599 = vld [vmem:[%s269 + $0x30] sm:$0xe]
        %v600 = vld [vmem:[%s269 + $0x34] sm:$0xf]
        %v601 = vld [vmem:[%s269 + $0x38] sm:$0x1]
        %v602 = vld [vmem:[%s269 + $0x3c] sm:$0xe]
        %v603 = vld [vmem:[%s269 + $0x40] sm:$0xf]
        %v604 = vld [vmem:[%s269 + $0x44] sm:$0x1]
        %v605 = vld [vmem:[%s269 + $0x48] sm:$0xe]
        %v606 = vld [vmem:[%s269 + $0x4c] sm:$0xf]
        %v607 = vld [vmem:[%s269 + $0x50] sm:$0x1]
        %v608 = vld [vmem:[%s269 + $0x54] sm:$0xe]
        %v609 = vld [vmem:[%s269 + $0x58] sm:$0xf]
        %v610 = vld [vmem:[%s269 + $0x5c] sm:$0x1]
        %vm635 = vcmask 1042432
        %vm636 = vcmask 1046532
        %vm637 = vmor %vm635, %vm636
        %v638 = vrot.slane %v587, 5
        %v639 = vrot.slane %v638, 4
        %v640 = vrot.slane %v588, 5
        %v641 = vsel %vm637, %v639, %v640
        %v642 = vrot.slane %v640, 4
        %v643 = vrot.slane %v589, 5
        %v644 = vsel %vm637, %v642, %v643
        %v645 = vrot.slane %v590, 5
        %v646 = vrot.slane %v645, 4
        %v647 = vrot.slane %v591, 5
        %v648 = vsel %vm637, %v646, %v647
        %v649 = vrot.slane %v647, 4
        %v650 = vrot.slane %v592, 5
        %v651 = vsel %vm637, %v649, %v650
        %v652 = vrot.slane %v593, 5
        %v653 = vrot.slane %v652, 4
        %v654 = vrot.slane %v594, 5
        %v655 = vsel %vm637, %v653, %v654
        %v656 = vrot.slane %v654, 4
        %v657 = vrot.slane %v595, 5
        %v658 = vsel %vm637, %v656, %v657
        %v659 = vrot.slane %v596, 5
        %v660 = vrot.slane %v659, 4
        %v661 = vrot.slane %v597, 5
        %v662 = vsel %vm637, %v660, %v661
        %v663 = vrot.slane %v661, 4
        %v664 = vrot.slane %v598, 5
        %v665 = vsel %vm637, %v663, %v664
        %v666 = vrot.slane %v599, 5
        %v667 = vrot.slane %v666, 4
        %v668 = vrot.slane %v600, 5
        %v669 = vsel %vm637, %v667, %v668
        %v670 = vrot.slane %v668, 4
        %v671 = vrot.slane %v601, 5
        %v672 = vsel %vm637, %v670, %v671
        %v673 = vrot.slane %v602, 5
        %v674 = vrot.slane %v673, 4
        %v675 = vrot.slane %v603, 5
        %v676 = vsel %vm637, %v674, %v675
        %v677 = vrot.slane %v675, 4
        %v678 = vrot.slane %v604, 5
        %v679 = vsel %vm637, %v677, %v678
        %v680 = vrot.slane %v605, 5
        %v681 = vrot.slane %v680, 4
        %v682 = vrot.slane %v606, 5
        %v683 = vsel %vm637, %v681, %v682
        %v684 = vrot.slane %v682, 4
        %v685 = vrot.slane %v607, 5
        %v686 = vsel %vm637, %v684, %v685
        %v687 = vrot.slane %v608, 5
        %v688 = vrot.slane %v687, 4
        %v689 = vrot.slane %v609, 5
        %v690 = vsel %vm637, %v688, %v689
        %v691 = vrot.slane %v689, 4
        %v692 = vrot.slane %v610, 5
        %v693 = vsel %vm637, %v691, %v692
        %694 = vrot.lane.b32.xlu0 %v641, 8
        %v695 = vpop.permute.xlu0 %694
        %696 = vrot.lane.b32.xlu0 %v644, 8
        %v697 = vpop.permute.xlu0 %696
        %698 = vrot.lane.b32.xlu0 %v648, 8
        %v699 = vpop.permute.xlu0 %698
        %700 = vrot.lane.b32.xlu0 %v651, 8
        %v701 = vpop.permute.xlu0 %700
        %702 = vrot.lane.b32.xlu0 %v655, 8
        %v703 = vpop.permute.xlu0 %702
        %704 = vrot.lane.b32.xlu0 %v658, 8
        %v705 = vpop.permute.xlu0 %704
        %706 = vrot.lane.b32.xlu0 %v662, 8
        %v707 = vpop.permute.xlu0 %706
        %708 = vrot.lane.b32.xlu0 %v665, 8
        %v709 = vpop.permute.xlu0 %708
        %710 = vrot.lane.b32.xlu0 %v669, 8
        %v711 = vpop.permute.xlu0 %710
        %712 = vrot.lane.b32.xlu0 %v672, 8
        %v713 = vpop.permute.xlu0 %712
        %714 = vrot.lane.b32.xlu0 %v676, 8
        %v715 = vpop.permute.xlu0 %714
        %716 = vrot.lane.b32.xlu0 %v679, 8
        %v717 = vpop.permute.xlu0 %716
        %718 = vrot.lane.b32.xlu0 %v683, 8
        %v719 = vpop.permute.xlu0 %718
        %720 = vrot.lane.b32.xlu0 %v686, 8
        %v721 = vpop.permute.xlu0 %720
        %722 = vrot.lane.b32.xlu0 %v690, 8
        %v723 = vpop.permute.xlu0 %722
        %724 = vrot.lane.b32.xlu0 %v693, 8
        %v725 = vpop.permute.xlu0 %724
        %vm742 = vcmask 93248
        %743 = vst.msk [vmem:[#allocation2] sm:$0xf] %vm742, %v695
        %744 = vst.msk [vmem:[#allocation2 + $0x4] sm:$0xf] %vm742, %v697
        %745 = vst.msk [vmem:[#allocation2 + $0x8] sm:$0xf] %vm742, %v699
        %746 = vst.msk [vmem:[#allocation2 + $0xc] sm:$0xf] %vm742, %v701
        %747 = vst.msk [vmem:[#allocation2 + $0x10] sm:$0xf] %vm742, %v703
        %748 = vst.msk [vmem:[#allocation2 + $0x14] sm:$0xf] %vm742, %v705
        %749 = vst.msk [vmem:[#allocation2 + $0x18] sm:$0xf] %vm742, %v707
        %750 = vst.msk [vmem:[#allocation2 + $0x1c] sm:$0xf] %vm742, %v709
        %751 = vst.msk [vmem:[#allocation2 + $0x20] sm:$0xf] %vm742, %v711
        %752 = vst.msk [vmem:[#allocation2 + $0x24] sm:$0xf] %vm742, %v713
        %753 = vst.msk [vmem:[#allocation2 + $0x28] sm:$0xf] %vm742, %v715
        %754 = vst.msk [vmem:[#allocation2 + $0x2c] sm:$0xf] %vm742, %v717
        %755 = vst.msk [vmem:[#allocation2 + $0x30] sm:$0xf] %vm742, %v719
        %756 = vst.msk [vmem:[#allocation2 + $0x34] sm:$0xf] %vm742, %v721
        %757 = vst.msk [vmem:[#allocation2 + $0x38] sm:$0xf] %vm742, %v723
        %758 = vst.msk [vmem:[#allocation2 + $0x3c] sm:$0xf] %vm742, %v725
        %s759 = sadd.s32 %s266, 1
        %s760 = smul.u32 %s759, 3
        %s761 = smul.addr %s760, 4
        %s762 = scalar_lea.vmem %s253, %s761
        %v763 = vld [vmem:[%s762] sm:$0xf]
        %v764 = vld [vmem:[%s762 + $0x4] sm:$0xf]
        %v765 = vld [vmem:[%s762 + $0xc] sm:$0xf]
        %v766 = vld [vmem:[%s762 + $0x10] sm:$0xf]
        %v767 = vld [vmem:[%s762 + $0x18] sm:$0xf]
        %v768 = vld [vmem:[%s762 + $0x1c] sm:$0xf]
        %v769 = vld [vmem:[%s762 + $0x24] sm:$0xf]
        %v770 = vld [vmem:[%s762 + $0x28] sm:$0xf]
        %v771 = vld [vmem:[%s762 + $0x30] sm:$0xf]
        %v772 = vld [vmem:[%s762 + $0x34] sm:$0xf]
        %v773 = vld [vmem:[%s762 + $0x3c] sm:$0xf]
        %v774 = vld [vmem:[%s762 + $0x40] sm:$0xf]
        %v775 = vld [vmem:[%s762 + $0x48] sm:$0xf]
        %v776 = vld [vmem:[%s762 + $0x4c] sm:$0xf]
        %v777 = vld [vmem:[%s762 + $0x54] sm:$0xf]
        %v778 = vld [vmem:[%s762 + $0x58] sm:$0xf]
        %795 = vrot.lane.b32.xlu0 %v763, 12
        %v796 = vpop.permute.xlu0 %795
        %797 = vrot.lane.b32.xlu0 %v764, 12
        %v798 = vpop.permute.xlu0 %797
        %799 = vrot.lane.b32.xlu0 %v765, 12
        %v800 = vpop.permute.xlu0 %799
        %801 = vrot.lane.b32.xlu0 %v766, 12
        %v802 = vpop.permute.xlu0 %801
        %803 = vrot.lane.b32.xlu0 %v767, 12
        %v804 = vpop.permute.xlu0 %803
        %805 = vrot.lane.b32.xlu0 %v768, 12
        %v806 = vpop.permute.xlu0 %805
        %807 = vrot.lane.b32.xlu0 %v769, 12
        %v808 = vpop.permute.xlu0 %807
        %809 = vrot.lane.b32.xlu0 %v770, 12
        %v810 = vpop.permute.xlu0 %809
        %811 = vrot.lane.b32.xlu0 %v771, 12
        %v812 = vpop.permute.xlu0 %811
        %813 = vrot.lane.b32.xlu0 %v772, 12
        %v814 = vpop.permute.xlu0 %813
        %815 = vrot.lane.b32.xlu0 %v773, 12
        %v816 = vpop.permute.xlu0 %815
        %817 = vrot.lane.b32.xlu0 %v774, 12
        %v818 = vpop.permute.xlu0 %817
        %819 = vrot.lane.b32.xlu0 %v775, 12
        %v820 = vpop.permute.xlu0 %819
        %821 = vrot.lane.b32.xlu0 %v776, 12
        %v822 = vpop.permute.xlu0 %821
        %823 = vrot.lane.b32.xlu0 %v777, 12
        %v824 = vpop.permute.xlu0 %823
        %825 = vrot.lane.b32.xlu0 %v778, 12
        %v826 = vpop.permute.xlu0 %825
        %vm843 = vcmask 126048
        %844 = vst.msk [vmem:[#allocation2] sm:$0xf] %vm843, %v796
        %845 = vst.msk [vmem:[#allocation2 + $0x4] sm:$0xf] %vm843, %v798
        %846 = vst.msk [vmem:[#allocation2 + $0x8] sm:$0xf] %vm843, %v800
        %847 = vst.msk [vmem:[#allocation2 + $0xc] sm:$0xf] %vm843, %v802
        %848 = vst.msk [vmem:[#allocation2 + $0x10] sm:$0xf] %vm843, %v804
        %849 = vst.msk [vmem:[#allocation2 + $0x14] sm:$0xf] %vm843, %v806
        %850 = vst.msk [vmem:[#allocation2 + $0x18] sm:$0xf] %vm843, %v808
        %851 = vst.msk [vmem:[#allocation2 + $0x1c] sm:$0xf] %vm843, %v810
        %852 = vst.msk [vmem:[#allocation2 + $0x20] sm:$0xf] %vm843, %v812
        %853 = vst.msk [vmem:[#allocation2 + $0x24] sm:$0xf] %vm843, %v814
        %854 = vst.msk [vmem:[#allocation2 + $0x28] sm:$0xf] %vm843, %v816
        %855 = vst.msk [vmem:[#allocation2 + $0x2c] sm:$0xf] %vm843, %v818
        %856 = vst.msk [vmem:[#allocation2 + $0x30] sm:$0xf] %vm843, %v820
        %857 = vst.msk [vmem:[#allocation2 + $0x34] sm:$0xf] %vm843, %v822
        %858 = vst.msk [vmem:[#allocation2 + $0x38] sm:$0xf] %vm843, %v824
        %859 = vst.msk [vmem:[#allocation2 + $0x3c] sm:$0xf] %vm843, %v826
        %v860 = vld [vmem:[%s762] sm:$0xf]
        %v861 = vld [vmem:[%s762 + $0x4] sm:$0xf]
        %v862 = vld [vmem:[%s762 + $0x8] sm:$0x1]
        %v863 = vld [vmem:[%s762 + $0xc] sm:$0xf]
        %v864 = vld [vmem:[%s762 + $0x10] sm:$0xf]
        %v865 = vld [vmem:[%s762 + $0x14] sm:$0x1]
        %v866 = vld [vmem:[%s762 + $0x18] sm:$0xf]
        %v867 = vld [vmem:[%s762 + $0x1c] sm:$0xf]
        %v868 = vld [vmem:[%s762 + $0x20] sm:$0x1]
        %v869 = vld [vmem:[%s762 + $0x24] sm:$0xf]
        %v870 = vld [vmem:[%s762 + $0x28] sm:$0xf]
        %v871 = vld [vmem:[%s762 + $0x2c] sm:$0x1]
        %v872 = vld [vmem:[%s762 + $0x30] sm:$0xf]
        %v873 = vld [vmem:[%s762 + $0x34] sm:$0xf]
        %v874 = vld [vmem:[%s762 + $0x38] sm:$0x1]
        %v875 = vld [vmem:[%s762 + $0x3c] sm:$0xf]
        %v876 = vld [vmem:[%s762 + $0x40] sm:$0xf]
        %v877 = vld [vmem:[%s762 + $0x44] sm:$0x1]
        %v878 = vld [vmem:[%s762 + $0x48] sm:$0xf]
        %v879 = vld [vmem:[%s762 + $0x4c] sm:$0xf]
        %v880 = vld [vmem:[%s762 + $0x50] sm:$0x1]
        %v881 = vld [vmem:[%s762 + $0x54] sm:$0xf]
        %v882 = vld [vmem:[%s762 + $0x58] sm:$0xf]
        %v883 = vld [vmem:[%s762 + $0x5c] sm:$0x1]
        %v885 = vshrl.u32 %v860, 16
        %v887 = vrot.slane %v885, 4
        %v888 = vshll.u32 %v860, 16
        %v890 = vrot.slane %v888, 5
        %v891 = vor.u32 %v887, %v890
        %v892 = vrot.slane %v891, 4
        %v894 = vshll.u32 %v861, 16
        %v896 = vrot.slane %v894, 5
        %v897 = vsel %vm329, %v892, %v896
        %v898 = vshrl.u32 %v861, 16
        %v900 = vrot.slane %v898, 4
        %v901 = vor.u32 %v900, %v896
        %v902 = vrot.slane %v901, 4
        %v904 = vshll.u32 %v862, 16
        %v906 = vrot.slane %v904, 5
        %v907 = vsel %vm329, %v902, %v906
        %v909 = vshrl.u32 %v863, 16
        %v911 = vrot.slane %v909, 4
        %v912 = vshll.u32 %v863, 16
        %v914 = vrot.slane %v912, 5
        %v915 = vor.u32 %v911, %v914
        %v916 = vrot.slane %v915, 4
        %v918 = vshll.u32 %v864, 16
        %v920 = vrot.slane %v918, 5
        %v921 = vsel %vm329, %v916, %v920
        %v922 = vshrl.u32 %v864, 16
        %v924 = vrot.slane %v922, 4
        %v925 = vor.u32 %v924, %v920
        %v926 = vrot.slane %v925, 4
        %v928 = vshll.u32 %v865, 16
        %v930 = vrot.slane %v928, 5
        %v931 = vsel %vm329, %v926, %v930
        %v933 = vshrl.u32 %v866, 16
        %v935 = vrot.slane %v933, 4
        %v936 = vshll.u32 %v866, 16
        %v938 = vrot.slane %v936, 5
        %v939 = vor.u32 %v935, %v938
        %v940 = vrot.slane %v939, 4
        %v942 = vshll.u32 %v867, 16
        %v944 = vrot.slane %v942, 5
        %v945 = vsel %vm329, %v940, %v944
        %v946 = vshrl.u32 %v867, 16
        %v948 = vrot.slane %v946, 4
        %v949 = vor.u32 %v948, %v944
        %v950 = vrot.slane %v949, 4
        %v952 = vshll.u32 %v868, 16
        %v954 = vrot.slane %v952, 5
        %v955 = vsel %vm329, %v950, %v954
        %v957 = vshrl.u32 %v869, 16
        %v959 = vrot.slane %v957, 4
        %v960 = vshll.u32 %v869, 16
        %v962 = vrot.slane %v960, 5
        %v963 = vor.u32 %v959, %v962
        %v964 = vrot.slane %v963, 4
        %v966 = vshll.u32 %v870, 16
        %v968 = vrot.slane %v966, 5
        %v969 = vsel %vm329, %v964, %v968
        %v970 = vshrl.u32 %v870, 16
        %v972 = vrot.slane %v970, 4
        %v973 = vor.u32 %v972, %v968
        %v974 = vrot.slane %v973, 4
        %v976 = vshll.u32 %v871, 16
        %v978 = vrot.slane %v976, 5
        %v979 = vsel %vm329, %v974, %v978
        %v981 = vshrl.u32 %v872, 16
        %v983 = vrot.slane %v981, 4
        %v984 = vshll.u32 %v872, 16
        %v986 = vrot.slane %v984, 5
        %v987 = vor.u32 %v983, %v986
        %v988 = vrot.slane %v987, 4
        %v990 = vshll.u32 %v873, 16
        %v992 = vrot.slane %v990, 5
        %v993 = vsel %vm329, %v988, %v992
        %v994 = vshrl.u32 %v873, 16
        %v996 = vrot.slane %v994, 4
        %v997 = vor.u32 %v996, %v992
        %v998 = vrot.slane %v997, 4
        %v1000 = vshll.u32 %v874, 16
        %v1002 = vrot.slane %v1000, 5
        %v1003 = vsel %vm329, %v998, %v1002
        %v1005 = vshrl.u32 %v875, 16
        %v1007 = vrot.slane %v1005, 4
        %v1008 = vshll.u32 %v875, 16
        %v1010 = vrot.slane %v1008, 5
        %v1011 = vor.u32 %v1007, %v1010
        %v1012 = vrot.slane %v1011, 4
        %v1014 = vshll.u32 %v876, 16
        %v1016 = vrot.slane %v1014, 5
        %v1017 = vsel %vm329, %v1012, %v1016
        %v1018 = vshrl.u32 %v876, 16
        %v1020 = vrot.slane %v1018, 4
        %v1021 = vor.u32 %v1020, %v1016
        %v1022 = vrot.slane %v1021, 4
        %v1024 = vshll.u32 %v877, 16
        %v1026 = vrot.slane %v1024, 5
        %v1027 = vsel %vm329, %v1022, %v1026
        %v1029 = vshrl.u32 %v878, 16
        %v1031 = vrot.slane %v1029, 4
        %v1032 = vshll.u32 %v878, 16
        %v1034 = vrot.slane %v1032, 5
        %v1035 = vor.u32 %v1031, %v1034
        %v1036 = vrot.slane %v1035, 4
        %v1038 = vshll.u32 %v879, 16
        %v1040 = vrot.slane %v1038, 5
        %v1041 = vsel %vm329, %v1036, %v1040
        %v1042 = vshrl.u32 %v879, 16
        %v1044 = vrot.slane %v1042, 4
        %v1045 = vor.u32 %v1044, %v1040
        %v1046 = vrot.slane %v1045, 4
        %v1048 = vshll.u32 %v880, 16
        %v1050 = vrot.slane %v1048, 5
        %v1051 = vsel %vm329, %v1046, %v1050
        %v1053 = vshrl.u32 %v881, 16
        %v1055 = vrot.slane %v1053, 4
        %v1056 = vshll.u32 %v881, 16
        %v1058 = vrot.slane %v1056, 5
        %v1059 = vor.u32 %v1055, %v1058
        %v1060 = vrot.slane %v1059, 4
        %v1062 = vshll.u32 %v882, 16
        %v1064 = vrot.slane %v1062, 5
        %v1065 = vsel %vm329, %v1060, %v1064
        %v1066 = vshrl.u32 %v882, 16
        %v1068 = vrot.slane %v1066, 4
        %v1069 = vor.u32 %v1068, %v1064
        %v1070 = vrot.slane %v1069, 4
        %v1072 = vshll.u32 %v883, 16
        %v1074 = vrot.slane %v1072, 5
        %v1075 = vsel %vm329, %v1070, %v1074
        %1076 = vrot.lane.b32.xlu0 %v897, 16
        %v1077 = vpop.permute.xlu0 %1076
        %1078 = vrot.lane.b32.xlu0 %v907, 16
        %v1079 = vpop.permute.xlu0 %1078
        %1080 = vrot.lane.b32.xlu0 %v921, 16
        %v1081 = vpop.permute.xlu0 %1080
        %1082 = vrot.lane.b32.xlu0 %v931, 16
        %v1083 = vpop.permute.xlu0 %1082
        %1084 = vrot.lane.b32.xlu0 %v945, 16
        %v1085 = vpop.permute.xlu0 %1084
        %1086 = vrot.lane.b32.xlu0 %v955, 16
        %v1087 = vpop.permute.xlu0 %1086
        %1088 = vrot.lane.b32.xlu0 %v969, 16
        %v1089 = vpop.permute.xlu0 %1088
        %1090 = vrot.lane.b32.xlu0 %v979, 16
        %v1091 = vpop.permute.xlu0 %1090
        %1092 = vrot.lane.b32.xlu0 %v993, 16
        %v1093 = vpop.permute.xlu0 %1092
        %1094 = vrot.lane.b32.xlu0 %v1003, 16
        %v1095 = vpop.permute.xlu0 %1094
        %1096 = vrot.lane.b32.xlu0 %v1017, 16
        %v1097 = vpop.permute.xlu0 %1096
        %1098 = vrot.lane.b32.xlu0 %v1027, 16
        %v1099 = vpop.permute.xlu0 %1098
        %1100 = vrot.lane.b32.xlu0 %v1041, 16
        %v1101 = vpop.permute.xlu0 %1100
        %1102 = vrot.lane.b32.xlu0 %v1051, 16
        %v1103 = vpop.permute.xlu0 %1102
        %1104 = vrot.lane.b32.xlu0 %v1065, 16
        %v1105 = vpop.permute.xlu0 %1104
        %1106 = vrot.lane.b32.xlu0 %v1075, 16
        %v1107 = vpop.permute.xlu0 %1106
        %vm1124 = vcmask 158848
        %1125 = vst.msk [vmem:[#allocation2] sm:$0xf] %vm1124, %v1077
        %1126 = vst.msk [vmem:[#allocation2 + $0x4] sm:$0xf] %vm1124, %v1079
        %1127 = vst.msk [vmem:[#allocation2 + $0x8] sm:$0xf] %vm1124, %v1081
        %1128 = vst.msk [vmem:[#allocation2 + $0xc] sm:$0xf] %vm1124, %v1083
        %1129 = vst.msk [vmem:[#allocation2 + $0x10] sm:$0xf] %vm1124, %v1085
        %1130 = vst.msk [vmem:[#allocation2 + $0x14] sm:$0xf] %vm1124, %v1087
        %1131 = vst.msk [vmem:[#allocation2 + $0x18] sm:$0xf] %vm1124, %v1089
        %1132 = vst.msk [vmem:[#allocation2 + $0x1c] sm:$0xf] %vm1124, %v1091
        %1133 = vst.msk [vmem:[#allocation2 + $0x20] sm:$0xf] %vm1124, %v1093
        %1134 = vst.msk [vmem:[#allocation2 + $0x24] sm:$0xf] %vm1124, %v1095
        %1135 = vst.msk [vmem:[#allocation2 + $0x28] sm:$0xf] %vm1124, %v1097
        %1136 = vst.msk [vmem:[#allocation2 + $0x2c] sm:$0xf] %vm1124, %v1099
        %1137 = vst.msk [vmem:[#allocation2 + $0x30] sm:$0xf] %vm1124, %v1101
        %1138 = vst.msk [vmem:[#allocation2 + $0x34] sm:$0xf] %vm1124, %v1103
        %1139 = vst.msk [vmem:[#allocation2 + $0x38] sm:$0xf] %vm1124, %v1105
        %1140 = vst.msk [vmem:[#allocation2 + $0x3c] sm:$0xf] %vm1124, %v1107
        %v1141 = vld [vmem:[%s762] sm:$0xe]
        %v1142 = vld [vmem:[%s762 + $0x4] sm:$0xf]
        %v1143 = vld [vmem:[%s762 + $0x8] sm:$0x1]
        %v1144 = vld [vmem:[%s762 + $0xc] sm:$0xe]
        %v1145 = vld [vmem:[%s762 + $0x10] sm:$0xf]
        %v1146 = vld [vmem:[%s762 + $0x14] sm:$0x1]
        %v1147 = vld [vmem:[%s762 + $0x18] sm:$0xe]
        %v1148 = vld [vmem:[%s762 + $0x1c] sm:$0xf]
        %v1149 = vld [vmem:[%s762 + $0x20] sm:$0x1]
        %v1150 = vld [vmem:[%s762 + $0x24] sm:$0xe]
        %v1151 = vld [vmem:[%s762 + $0x28] sm:$0xf]
        %v1152 = vld [vmem:[%s762 + $0x2c] sm:$0x1]
        %v1153 = vld [vmem:[%s762 + $0x30] sm:$0xe]
        %v1154 = vld [vmem:[%s762 + $0x34] sm:$0xf]
        %v1155 = vld [vmem:[%s762 + $0x38] sm:$0x1]
        %v1156 = vld [vmem:[%s762 + $0x3c] sm:$0xe]
        %v1157 = vld [vmem:[%s762 + $0x40] sm:$0xf]
        %v1158 = vld [vmem:[%s762 + $0x44] sm:$0x1]
        %v1159 = vld [vmem:[%s762 + $0x48] sm:$0xe]
        %v1160 = vld [vmem:[%s762 + $0x4c] sm:$0xf]
        %v1161 = vld [vmem:[%s762 + $0x50] sm:$0x1]
        %v1162 = vld [vmem:[%s762 + $0x54] sm:$0xe]
        %v1163 = vld [vmem:[%s762 + $0x58] sm:$0xf]
        %v1164 = vld [vmem:[%s762 + $0x5c] sm:$0x1]
        %v1189 = vrot.slane %v1141, 5
        %v1190 = vrot.slane %v1189, 4
        %v1191 = vrot.slane %v1142, 5
        %v1192 = vsel %vm637, %v1190, %v1191
        %v1193 = vrot.slane %v1191, 4
        %v1194 = vrot.slane %v1143, 5
        %v1195 = vsel %vm637, %v1193, %v1194
        %v1196 = vrot.slane %v1144, 5
        %v1197 = vrot.slane %v1196, 4
        %v1198 = vrot.slane %v1145, 5
        %v1199 = vsel %vm637, %v1197, %v1198
        %v1200 = vrot.slane %v1198, 4
        %v1201 = vrot.slane %v1146, 5
        %v1202 = vsel %vm637, %v1200, %v1201
        %v1203 = vrot.slane %v1147, 5
        %v1204 = vrot.slane %v1203, 4
        %v1205 = vrot.slane %v1148, 5
        %v1206 = vsel %vm637, %v1204, %v1205
        %v1207 = vrot.slane %v1205, 4
        %v1208 = vrot.slane %v1149, 5
        %v1209 = vsel %vm637, %v1207, %v1208
        %v1210 = vrot.slane %v1150, 5
        %v1211 = vrot.slane %v1210, 4
        %v1212 = vrot.slane %v1151, 5
        %v1213 = vsel %vm637, %v1211, %v1212
        %v1214 = vrot.slane %v1212, 4
        %v1215 = vrot.slane %v1152, 5
        %v1216 = vsel %vm637, %v1214, %v1215
        %v1217 = vrot.slane %v1153, 5
        %v1218 = vrot.slane %v1217, 4
        %v1219 = vrot.slane %v1154, 5
        %v1220 = vsel %vm637, %v1218, %v1219
        %v1221 = vrot.slane %v1219, 4
        %v1222 = vrot.slane %v1155, 5
        %v1223 = vsel %vm637, %v1221, %v1222
        %v1224 = vrot.slane %v1156, 5
        %v1225 = vrot.slane %v1224, 4
        %v1226 = vrot.slane %v1157, 5
        %v1227 = vsel %vm637, %v1225, %v1226
        %v1228 = vrot.slane %v1226, 4
        %v1229 = vrot.slane %v1158, 5
        %v1230 = vsel %vm637, %v1228, %v1229
        %v1231 = vrot.slane %v1159, 5
        %v1232 = vrot.slane %v1231, 4
        %v1233 = vrot.slane %v1160, 5
        %v1234 = vsel %vm637, %v1232, %v1233
        %v1235 = vrot.slane %v1233, 4
        %v1236 = vrot.slane %v1161, 5
        %v1237 = vsel %vm637, %v1235, %v1236
        %v1238 = vrot.slane %v1162, 5
        %v1239 = vrot.slane %v1238, 4
        %v1240 = vrot.slane %v1163, 5
        %v1241 = vsel %vm637, %v1239, %v1240
        %v1242 = vrot.slane %v1240, 4
        %v1243 = vrot.slane %v1164, 5
        %v1244 = vsel %vm637, %v1242, %v1243
        %1245 = vrot.lane.b32.xlu0 %v1192, 20
        %v1246 = vpop.permute.xlu0 %1245
        %1247 = vrot.lane.b32.xlu0 %v1195, 20
        %v1248 = vpop.permute.xlu0 %1247
        %1249 = vrot.lane.b32.xlu0 %v1199, 20
        %v1250 = vpop.permute.xlu0 %1249
        %1251 = vrot.lane.b32.xlu0 %v1202, 20
        %v1252 = vpop.permute.xlu0 %1251
        %1253 = vrot.lane.b32.xlu0 %v1206, 20
        %v1254 = vpop.permute.xlu0 %1253
        %1255 = vrot.lane.b32.xlu0 %v1209, 20
        %v1256 = vpop.permute.xlu0 %1255
        %1257 = vrot.lane.b32.xlu0 %v1213, 20
        %v1258 = vpop.permute.xlu0 %1257
        %1259 = vrot.lane.b32.xlu0 %v1216, 20
        %v1260 = vpop.permute.xlu0 %1259
        %1261 = vrot.lane.b32.xlu0 %v1220, 20
        %v1262 = vpop.permute.xlu0 %1261
        %1263 = vrot.lane.b32.xlu0 %v1223, 20
        %v1264 = vpop.permute.xlu0 %1263
        %1265 = vrot.lane.b32.xlu0 %v1227, 20
        %v1266 = vpop.permute.xlu0 %1265
        %1267 = vrot.lane.b32.xlu0 %v1230, 20
        %v1268 = vpop.permute.xlu0 %1267
        %1269 = vrot.lane.b32.xlu0 %v1234, 20
        %v1270 = vpop.permute.xlu0 %1269
        %1271 = vrot.lane.b32.xlu0 %v1237, 20
        %v1272 = vpop.permute.xlu0 %1271
        %1273 = vrot.lane.b32.xlu0 %v1241, 20
        %v1274 = vpop.permute.xlu0 %1273
        %1275 = vrot.lane.b32.xlu0 %v1244, 20
        %v1276 = vpop.permute.xlu0 %1275
        %vm1293 = vcmask 191648
        %1294 = vst.msk [vmem:[#allocation2] sm:$0xf] %vm1293, %v1246
        %1295 = vst.msk [vmem:[#allocation2 + $0x4] sm:$0xf] %vm1293, %v1248
        %1296 = vst.msk [vmem:[#allocation2 + $0x8] sm:$0xf] %vm1293, %v1250
        %1297 = vst.msk [vmem:[#allocation2 + $0xc] sm:$0xf] %vm1293, %v1252
        %1298 = vst.msk [vmem:[#allocation2 + $0x10] sm:$0xf] %vm1293, %v1254
        %1299 = vst.msk [vmem:[#allocation2 + $0x14] sm:$0xf] %vm1293, %v1256
        %1300 = vst.msk [vmem:[#allocation2 + $0x18] sm:$0xf] %vm1293, %v1258
        %1301 = vst.msk [vmem:[#allocation2 + $0x1c] sm:$0xf] %vm1293, %v1260
        %1302 = vst.msk [vmem:[#allocation2 + $0x20] sm:$0xf] %vm1293, %v1262
        %1303 = vst.msk [vmem:[#allocation2 + $0x24] sm:$0xf] %vm1293, %v1264
        %1304 = vst.msk [vmem:[#allocation2 + $0x28] sm:$0xf] %vm1293, %v1266
        %1305 = vst.msk [vmem:[#allocation2 + $0x2c] sm:$0xf] %vm1293, %v1268
        %1306 = vst.msk [vmem:[#allocation2 + $0x30] sm:$0xf] %vm1293, %v1270
        %1307 = vst.msk [vmem:[#allocation2 + $0x34] sm:$0xf] %vm1293, %v1272
        %1308 = vst.msk [vmem:[#allocation2 + $0x38] sm:$0xf] %vm1293, %v1274
        %1309 = vst.msk [vmem:[#allocation2 + $0x3c] sm:$0xf] %vm1293, %v1276
        %s1310 = sadd.s32 %s266, 2
        %s1311 = smul.u32 %s1310, 3
        %s1312 = smul.addr %s1311, 4
        %s1313 = scalar_lea.vmem %s253, %s1312
        %v1314 = vld [vmem:[%s1313] sm:$0xf]
        %v1315 = vld [vmem:[%s1313 + $0x4] sm:$0xf]
        %v1316 = vld [vmem:[%s1313 + $0xc] sm:$0xf]
        %v1317 = vld [vmem:[%s1313 + $0x10] sm:$0xf]
        %v1318 = vld [vmem:[%s1313 + $0x18] sm:$0xf]
        %v1319 = vld [vmem:[%s1313 + $0x1c] sm:$0xf]
        %v1320 = vld [vmem:[%s1313 + $0x24] sm:$0xf]
        %v1321 = vld [vmem:[%s1313 + $0x28] sm:$0xf]
        %v1322 = vld [vmem:[%s1313 + $0x30] sm:$0xf]
        %v1323 = vld [vmem:[%s1313 + $0x34] sm:$0xf]
        %v1324 = vld [vmem:[%s1313 + $0x3c] sm:$0xf]
        %v1325 = vld [vmem:[%s1313 + $0x40] sm:$0xf]
        %v1326 = vld [vmem:[%s1313 + $0x48] sm:$0xf]
        %v1327 = vld [vmem:[%s1313 + $0x4c] sm:$0xf]
        %v1328 = vld [vmem:[%s1313 + $0x54] sm:$0xf]
        %v1329 = vld [vmem:[%s1313 + $0x58] sm:$0xf]
        %1346 = vrot.lane.b32.xlu0 %v1314, 24
        %v1347 = vpop.permute.xlu0 %1346
        %1348 = vrot.lane.b32.xlu0 %v1315, 24
        %v1349 = vpop.permute.xlu0 %1348
        %1350 = vrot.lane.b32.xlu0 %v1316, 24
        %v1351 = vpop.permute.xlu0 %1350
        %1352 = vrot.lane.b32.xlu0 %v1317, 24
        %v1353 = vpop.permute.xlu0 %1352
        %1354 = vrot.lane.b32.xlu0 %v1318, 24
        %v1355 = vpop.permute.xlu0 %1354
        %1356 = vrot.lane.b32.xlu0 %v1319, 24
        %v1357 = vpop.permute.xlu0 %1356
        %1358 = vrot.lane.b32.xlu0 %v1320, 24
        %v1359 = vpop.permute.xlu0 %1358
        %1360 = vrot.lane.b32.xlu0 %v1321, 24
        %v1361 = vpop.permute.xlu0 %1360
        %1362 = vrot.lane.b32.xlu0 %v1322, 24
        %v1363 = vpop.permute.xlu0 %1362
        %1364 = vrot.lane.b32.xlu0 %v1323, 24
        %v1365 = vpop.permute.xlu0 %1364
        %1366 = vrot.lane.b32.xlu0 %v1324, 24
        %v1367 = vpop.permute.xlu0 %1366
        %1368 = vrot.lane.b32.xlu0 %v1325, 24
        %v1369 = vpop.permute.xlu0 %1368
        %1370 = vrot.lane.b32.xlu0 %v1326, 24
        %v1371 = vpop.permute.xlu0 %1370
        %1372 = vrot.lane.b32.xlu0 %v1327, 24
        %v1373 = vpop.permute.xlu0 %1372
        %1374 = vrot.lane.b32.xlu0 %v1328, 24
        %v1375 = vpop.permute.xlu0 %1374
        %1376 = vrot.lane.b32.xlu0 %v1329, 24
        %v1377 = vpop.permute.xlu0 %1376
        %vm1394 = vcmask 224448
        %1395 = vst.msk [vmem:[#allocation2] sm:$0xf] %vm1394, %v1347
        %1396 = vst.msk [vmem:[#allocation2 + $0x4] sm:$0xf] %vm1394, %v1349
        %1397 = vst.msk [vmem:[#allocation2 + $0x8] sm:$0xf] %vm1394, %v1351
        %1398 = vst.msk [vmem:[#allocation2 + $0xc] sm:$0xf] %vm1394, %v1353
        %1399 = vst.msk [vmem:[#allocation2 + $0x10] sm:$0xf] %vm1394, %v1355
        %1400 = vst.msk [vmem:[#allocation2 + $0x14] sm:$0xf] %vm1394, %v1357
        %1401 = vst.msk [vmem:[#allocation2 + $0x18] sm:$0xf] %vm1394, %v1359
        %1402 = vst.msk [vmem:[#allocation2 + $0x1c] sm:$0xf] %vm1394, %v1361
        %1403 = vst.msk [vmem:[#allocation2 + $0x20] sm:$0xf] %vm1394, %v1363
        %1404 = vst.msk [vmem:[#allocation2 + $0x24] sm:$0xf] %vm1394, %v1365
        %1405 = vst.msk [vmem:[#allocation2 + $0x28] sm:$0xf] %vm1394, %v1367
        %1406 = vst.msk [vmem:[#allocation2 + $0x2c] sm:$0xf] %vm1394, %v1369
        %1407 = vst.msk [vmem:[#allocation2 + $0x30] sm:$0xf] %vm1394, %v1371
        %1408 = vst.msk [vmem:[#allocation2 + $0x34] sm:$0xf] %vm1394, %v1373
        %1409 = vst.msk [vmem:[#allocation2 + $0x38] sm:$0xf] %vm1394, %v1375
        %1410 = vst.msk [vmem:[#allocation2 + $0x3c] sm:$0xf] %vm1394, %v1377
        %v1411 = vld [vmem:[%s1313] sm:$0xf]
        %v1412 = vld [vmem:[%s1313 + $0x4] sm:$0xf]
        %v1413 = vld [vmem:[%s1313 + $0x8] sm:$0x1]
        %v1414 = vld [vmem:[%s1313 + $0xc] sm:$0xf]
        %v1415 = vld [vmem:[%s1313 + $0x10] sm:$0xf]
        %v1416 = vld [vmem:[%s1313 + $0x14] sm:$0x1]
        %v1417 = vld [vmem:[%s1313 + $0x18] sm:$0xf]
        %v1418 = vld [vmem:[%s1313 + $0x1c] sm:$0xf]
        %v1419 = vld [vmem:[%s1313 + $0x20] sm:$0x1]
        %v1420 = vld [vmem:[%s1313 + $0x24] sm:$0xf]
        %v1421 = vld [vmem:[%s1313 + $0x28] sm:$0xf]
        %v1422 = vld [vmem:[%s1313 + $0x2c] sm:$0x1]
        %v1423 = vld [vmem:[%s1313 + $0x30] sm:$0xf]
        %v1424 = vld [vmem:[%s1313 + $0x34] sm:$0xf]
        %v1425 = vld [vmem:[%s1313 + $0x38] sm:$0x1]
        %v1426 = vld [vmem:[%s1313 + $0x3c] sm:$0xf]
        %v1427 = vld [vmem:[%s1313 + $0x40] sm:$0xf]
        %v1428 = vld [vmem:[%s1313 + $0x44] sm:$0x1]
        %v1429 = vld [vmem:[%s1313 + $0x48] sm:$0xf]
        %v1430 = vld [vmem:[%s1313 + $0x4c] sm:$0xf]
        %v1431 = vld [vmem:[%s1313 + $0x50] sm:$0x1]
        %v1432 = vld [vmem:[%s1313 + $0x54] sm:$0xf]
        %v1433 = vld [vmem:[%s1313 + $0x58] sm:$0xf]
        %v1434 = vld [vmem:[%s1313 + $0x5c] sm:$0x1]
        %v1436 = vshrl.u32 %v1411, 16
        %v1438 = vrot.slane %v1436, 4
        %v1439 = vshll.u32 %v1411, 16
        %v1441 = vrot.slane %v1439, 5
        %v1442 = vor.u32 %v1438, %v1441
        %v1443 = vrot.slane %v1442, 4
        %v1445 = vshll.u32 %v1412, 16
        %v1447 = vrot.slane %v1445, 5
        %v1448 = vsel %vm329, %v1443, %v1447
        %v1449 = vshrl.u32 %v1412, 16
        %v1451 = vrot.slane %v1449, 4
        %v1452 = vor.u32 %v1451, %v1447
        %v1453 = vrot.slane %v1452, 4
        %v1455 = vshll.u32 %v1413, 16
        %v1457 = vrot.slane %v1455, 5
        %v1458 = vsel %vm329, %v1453, %v1457
        %v1460 = vshrl.u32 %v1414, 16
        %v1462 = vrot.slane %v1460, 4
        %v1463 = vshll.u32 %v1414, 16
        %v1465 = vrot.slane %v1463, 5
        %v1466 = vor.u32 %v1462, %v1465
        %v1467 = vrot.slane %v1466, 4
        %v1469 = vshll.u32 %v1415, 16
        %v1471 = vrot.slane %v1469, 5
        %v1472 = vsel %vm329, %v1467, %v1471
        %v1473 = vshrl.u32 %v1415, 16
        %v1475 = vrot.slane %v1473, 4
        %v1476 = vor.u32 %v1475, %v1471
        %v1477 = vrot.slane %v1476, 4
        %v1479 = vshll.u32 %v1416, 16
        %v1481 = vrot.slane %v1479, 5
        %v1482 = vsel %vm329, %v1477, %v1481
        %v1484 = vshrl.u32 %v1417, 16
        %v1486 = vrot.slane %v1484, 4
        %v1487 = vshll.u32 %v1417, 16
        %v1489 = vrot.slane %v1487, 5
        %v1490 = vor.u32 %v1486, %v1489
        %v1491 = vrot.slane %v1490, 4
        %v1493 = vshll.u32 %v1418, 16
        %v1495 = vrot.slane %v1493, 5
        %v1496 = vsel %vm329, %v1491, %v1495
        %v1497 = vshrl.u32 %v1418, 16
        %v1499 = vrot.slane %v1497, 4
        %v1500 = vor.u32 %v1499, %v1495
        %v1501 = vrot.slane %v1500, 4
        %v1503 = vshll.u32 %v1419, 16
        %v1505 = vrot.slane %v1503, 5
        %v1506 = vsel %vm329, %v1501, %v1505
        %v1508 = vshrl.u32 %v1420, 16
        %v1510 = vrot.slane %v1508, 4
        %v1511 = vshll.u32 %v1420, 16
        %v1513 = vrot.slane %v1511, 5
        %v1514 = vor.u32 %v1510, %v1513
        %v1515 = vrot.slane %v1514, 4
        %v1517 = vshll.u32 %v1421, 16
        %v1519 = vrot.slane %v1517, 5
        %v1520 = vsel %vm329, %v1515, %v1519
        %v1521 = vshrl.u32 %v1421, 16
        %v1523 = vrot.slane %v1521, 4
        %v1524 = vor.u32 %v1523, %v1519
        %v1525 = vrot.slane %v1524, 4
        %v1527 = vshll.u32 %v1422, 16
        %v1529 = vrot.slane %v1527, 5
        %v1530 = vsel %vm329, %v1525, %v1529
        %v1532 = vshrl.u32 %v1423, 16
        %v1534 = vrot.slane %v1532, 4
        %v1535 = vshll.u32 %v1423, 16
        %v1537 = vrot.slane %v1535, 5
        %v1538 = vor.u32 %v1534, %v1537
        %v1539 = vrot.slane %v1538, 4
        %v1541 = vshll.u32 %v1424, 16
        %v1543 = vrot.slane %v1541, 5
        %v1544 = vsel %vm329, %v1539, %v1543
        %v1545 = vshrl.u32 %v1424, 16
        %v1547 = vrot.slane %v1545, 4
        %v1548 = vor.u32 %v1547, %v1543
        %v1549 = vrot.slane %v1548, 4
        %v1551 = vshll.u32 %v1425, 16
        %v1553 = vrot.slane %v1551, 5
        %v1554 = vsel %vm329, %v1549, %v1553
        %v1556 = vshrl.u32 %v1426, 16
        %v1558 = vrot.slane %v1556, 4
        %v1559 = vshll.u32 %v1426, 16
        %v1561 = vrot.slane %v1559, 5
        %v1562 = vor.u32 %v1558, %v1561
        %v1563 = vrot.slane %v1562, 4
        %v1565 = vshll.u32 %v1427, 16
        %v1567 = vrot.slane %v1565, 5
        %v1568 = vsel %vm329, %v1563, %v1567
        %v1569 = vshrl.u32 %v1427, 16
        %v1571 = vrot.slane %v1569, 4
        %v1572 = vor.u32 %v1571, %v1567
        %v1573 = vrot.slane %v1572, 4
        %v1575 = vshll.u32 %v1428, 16
        %v1577 = vrot.slane %v1575, 5
        %v1578 = vsel %vm329, %v1573, %v1577
        %v1580 = vshrl.u32 %v1429, 16
        %v1582 = vrot.slane %v1580, 4
        %v1583 = vshll.u32 %v1429, 16
        %v1585 = vrot.slane %v1583, 5
        %v1586 = vor.u32 %v1582, %v1585
        %v1587 = vrot.slane %v1586, 4
        %v1589 = vshll.u32 %v1430, 16
        %v1591 = vrot.slane %v1589, 5
        %v1592 = vsel %vm329, %v1587, %v1591
        %v1593 = vshrl.u32 %v1430, 16
        %v1595 = vrot.slane %v1593, 4
        %v1596 = vor.u32 %v1595, %v1591
        %v1597 = vrot.slane %v1596, 4
        %v1599 = vshll.u32 %v1431, 16
        %v1601 = vrot.slane %v1599, 5
        %v1602 = vsel %vm329, %v1597, %v1601
        %v1604 = vshrl.u32 %v1432, 16
        %v1606 = vrot.slane %v1604, 4
        %v1607 = vshll.u32 %v1432, 16
        %v1609 = vrot.slane %v1607, 5
        %v1610 = vor.u32 %v1606, %v1609
        %v1611 = vrot.slane %v1610, 4
        %v1613 = vshll.u32 %v1433, 16
        %v1615 = vrot.slane %v1613, 5
        %v1616 = vsel %vm329, %v1611, %v1615
        %v1617 = vshrl.u32 %v1433, 16
        %v1619 = vrot.slane %v1617, 4
        %v1620 = vor.u32 %v1619, %v1615
        %v1621 = vrot.slane %v1620, 4
        %v1623 = vshll.u32 %v1434, 16
        %v1625 = vrot.slane %v1623, 5
        %v1626 = vsel %vm329, %v1621, %v1625
        %1627 = vrot.lane.b32.xlu0 %v1448, 28
        %v1628 = vpop.permute.xlu0 %1627
        %1629 = vrot.lane.b32.xlu0 %v1458, 28
        %v1630 = vpop.permute.xlu0 %1629
        %1631 = vrot.lane.b32.xlu0 %v1472, 28
        %v1632 = vpop.permute.xlu0 %1631
        %1633 = vrot.lane.b32.xlu0 %v1482, 28
        %v1634 = vpop.permute.xlu0 %1633
        %1635 = vrot.lane.b32.xlu0 %v1496, 28
        %v1636 = vpop.permute.xlu0 %1635
        %1637 = vrot.lane.b32.xlu0 %v1506, 28
        %v1638 = vpop.permute.xlu0 %1637
        %1639 = vrot.lane.b32.xlu0 %v1520, 28
        %v1640 = vpop.permute.xlu0 %1639
        %1641 = vrot.lane.b32.xlu0 %v1530, 28
        %v1642 = vpop.permute.xlu0 %1641
        %1643 = vrot.lane.b32.xlu0 %v1544, 28
        %v1644 = vpop.permute.xlu0 %1643
        %1645 = vrot.lane.b32.xlu0 %v1554, 28
        %v1646 = vpop.permute.xlu0 %1645
        %1647 = vrot.lane.b32.xlu0 %v1568, 28
        %v1648 = vpop.permute.xlu0 %1647
        %1649 = vrot.lane.b32.xlu0 %v1578, 28
        %v1650 = vpop.permute.xlu0 %1649
        %1651 = vrot.lane.b32.xlu0 %v1592, 28
        %v1652 = vpop.permute.xlu0 %1651
        %1653 = vrot.lane.b32.xlu0 %v1602, 28
        %v1654 = vpop.permute.xlu0 %1653
        %1655 = vrot.lane.b32.xlu0 %v1616, 28
        %v1656 = vpop.permute.xlu0 %1655
        %1657 = vrot.lane.b32.xlu0 %v1626, 28
        %v1658 = vpop.permute.xlu0 %1657
        %vm1675 = vcmask 257248
        %1676 = vst.msk [vmem:[#allocation2] sm:$0xf] %vm1675, %v1628
        %1677 = vst.msk [vmem:[#allocation2 + $0x4] sm:$0xf] %vm1675, %v1630
        %1678 = vst.msk [vmem:[#allocation2 + $0x8] sm:$0xf] %vm1675, %v1632
        %1679 = vst.msk [vmem:[#allocation2 + $0xc] sm:$0xf] %vm1675, %v1634
        %1680 = vst.msk [vmem:[#allocation2 + $0x10] sm:$0xf] %vm1675, %v1636
        %1681 = vst.msk [vmem:[#allocation2 + $0x14] sm:$0xf] %vm1675, %v1638
        %1682 = vst.msk [vmem:[#allocation2 + $0x18] sm:$0xf] %vm1675, %v1640
        %1683 = vst.msk [vmem:[#allocation2 + $0x1c] sm:$0xf] %vm1675, %v1642
        %1684 = vst.msk [vmem:[#allocation2 + $0x20] sm:$0xf] %vm1675, %v1644
        %1685 = vst.msk [vmem:[#allocation2 + $0x24] sm:$0xf] %vm1675, %v1646
        %1686 = vst.msk [vmem:[#allocation2 + $0x28] sm:$0xf] %vm1675, %v1648
        %1687 = vst.msk [vmem:[#allocation2 + $0x2c] sm:$0xf] %vm1675, %v1650
        %1688 = vst.msk [vmem:[#allocation2 + $0x30] sm:$0xf] %vm1675, %v1652
        %1689 = vst.msk [vmem:[#allocation2 + $0x34] sm:$0xf] %vm1675, %v1654
        %1690 = vst.msk [vmem:[#allocation2 + $0x38] sm:$0xf] %vm1675, %v1656
        %1691 = vst.msk [vmem:[#allocation2 + $0x3c] sm:$0xf] %vm1675, %v1658
        %v1692 = vld [vmem:[%s1313] sm:$0xe]
        %v1693 = vld [vmem:[%s1313 + $0x4] sm:$0xf]
        %v1694 = vld [vmem:[%s1313 + $0x8] sm:$0x1]
        %v1695 = vld [vmem:[%s1313 + $0xc] sm:$0xe]
        %v1696 = vld [vmem:[%s1313 + $0x10] sm:$0xf]
        %v1697 = vld [vmem:[%s1313 + $0x14] sm:$0x1]
        %v1698 = vld [vmem:[%s1313 + $0x18] sm:$0xe]
        %v1699 = vld [vmem:[%s1313 + $0x1c] sm:$0xf]
        %v1700 = vld [vmem:[%s1313 + $0x20] sm:$0x1]
        %v1701 = vld [vmem:[%s1313 + $0x24] sm:$0xe]
        %v1702 = vld [vmem:[%s1313 + $0x28] sm:$0xf]
        %v1703 = vld [vmem:[%s1313 + $0x2c] sm:$0x1]
        %v1704 = vld [vmem:[%s1313 + $0x30] sm:$0xe]
        %v1705 = vld [vmem:[%s1313 + $0x34] sm:$0xf]
        %v1706 = vld [vmem:[%s1313 + $0x38] sm:$0x1]
        %v1707 = vld [vmem:[%s1313 + $0x3c] sm:$0xe]
        %v1708 = vld [vmem:[%s1313 + $0x40] sm:$0xf]
        %v1709 = vld [vmem:[%s1313 + $0x44] sm:$0x1]
        %v1710 = vld [vmem:[%s1313 + $0x48] sm:$0xe]
        %v1711 = vld [vmem:[%s1313 + $0x4c] sm:$0xf]
        %v1712 = vld [vmem:[%s1313 + $0x50] sm:$0x1]
        %v1713 = vld [vmem:[%s1313 + $0x54] sm:$0xe]
        %v1714 = vld [vmem:[%s1313 + $0x58] sm:$0xf]
        %v1715 = vld [vmem:[%s1313 + $0x5c] sm:$0x1]
        %v1740 = vrot.slane %v1692, 5
        %v1741 = vrot.slane %v1740, 4
        %v1742 = vrot.slane %v1693, 5
        %v1743 = vsel %vm637, %v1741, %v1742
        %v1744 = vrot.slane %v1742, 4
        %v1745 = vrot.slane %v1694, 5
        %v1746 = vsel %vm637, %v1744, %v1745
        %v1747 = vrot.slane %v1695, 5
        %v1748 = vrot.slane %v1747, 4
        %v1749 = vrot.slane %v1696, 5
        %v1750 = vsel %vm637, %v1748, %v1749
        %v1751 = vrot.slane %v1749, 4
        %v1752 = vrot.slane %v1697, 5
        %v1753 = vsel %vm637, %v1751, %v1752
        %v1754 = vrot.slane %v1698, 5
        %v1755 = vrot.slane %v1754, 4
        %v1756 = vrot.slane %v1699, 5
        %v1757 = vsel %vm637, %v1755, %v1756
        %v1758 = vrot.slane %v1756, 4
        %v1759 = vrot.slane %v1700, 5
        %v1760 = vsel %vm637, %v1758, %v1759
        %v1761 = vrot.slane %v1701, 5
        %v1762 = vrot.slane %v1761, 4
        %v1763 = vrot.slane %v1702, 5
        %v1764 = vsel %vm637, %v1762, %v1763
        %v1765 = vrot.slane %v1763, 4
        %v1766 = vrot.slane %v1703, 5
        %v1767 = vsel %vm637, %v1765, %v1766
        %v1768 = vrot.slane %v1704, 5
        %v1769 = vrot.slane %v1768, 4
        %v1770 = vrot.slane %v1705, 5
        %v1771 = vsel %vm637, %v1769, %v1770
        %v1772 = vrot.slane %v1770, 4
        %v1773 = vrot.slane %v1706, 5
        %v1774 = vsel %vm637, %v1772, %v1773
        %v1775 = vrot.slane %v1707, 5
        %v1776 = vrot.slane %v1775, 4
        %v1777 = vrot.slane %v1708, 5
        %v1778 = vsel %vm637, %v1776, %v1777
        %v1779 = vrot.slane %v1777, 4
        %v1780 = vrot.slane %v1709, 5
        %v1781 = vsel %vm637, %v1779, %v1780
        %v1782 = vrot.slane %v1710, 5
        %v1783 = vrot.slane %v1782, 4
        %v1784 = vrot.slane %v1711, 5
        %v1785 = vsel %vm637, %v1783, %v1784
        %v1786 = vrot.slane %v1784, 4
        %v1787 = vrot.slane %v1712, 5
        %v1788 = vsel %vm637, %v1786, %v1787
        %v1789 = vrot.slane %v1713, 5
        %v1790 = vrot.slane %v1789, 4
        %v1791 = vrot.slane %v1714, 5
        %v1792 = vsel %vm637, %v1790, %v1791
        %v1793 = vrot.slane %v1791, 4
        %v1794 = vrot.slane %v1715, 5
        %v1795 = vsel %vm637, %v1793, %v1794
        %1796 = vrot.lane.b32.xlu0 %v1743, 32
        %v1797 = vpop.permute.xlu0 %1796
        %1798 = vrot.lane.b32.xlu0 %v1746, 32
        %v1799 = vpop.permute.xlu0 %1798
        %1800 = vrot.lane.b32.xlu0 %v1750, 32
        %v1801 = vpop.permute.xlu0 %1800
        %1802 = vrot.lane.b32.xlu0 %v1753, 32
        %v1803 = vpop.permute.xlu0 %1802
        %1804 = vrot.lane.b32.xlu0 %v1757, 32
        %v1805 = vpop.permute.xlu0 %1804
        %1806 = vrot.lane.b32.xlu0 %v1760, 32
        %v1807 = vpop.permute.xlu0 %1806
        %1808 = vrot.lane.b32.xlu0 %v1764, 32
        %v1809 = vpop.permute.xlu0 %1808
        %1810 = vrot.lane.b32.xlu0 %v1767, 32
        %v1811 = vpop.permute.xlu0 %1810
        %1812 = vrot.lane.b32.xlu0 %v1771, 32
        %v1813 = vpop.permute.xlu0 %1812
        %1814 = vrot.lane.b32.xlu0 %v1774, 32
        %v1815 = vpop.permute.xlu0 %1814
        %1816 = vrot.lane.b32.xlu0 %v1778, 32
        %v1817 = vpop.permute.xlu0 %1816
        %1818 = vrot.lane.b32.xlu0 %v1781, 32
        %v1819 = vpop.permute.xlu0 %1818
        %1820 = vrot.lane.b32.xlu0 %v1785, 32
        %v1821 = vpop.permute.xlu0 %1820
        %1822 = vrot.lane.b32.xlu0 %v1788, 32
        %v1823 = vpop.permute.xlu0 %1822
        %1824 = vrot.lane.b32.xlu0 %v1792, 32
        %v1825 = vpop.permute.xlu0 %1824
        %1826 = vrot.lane.b32.xlu0 %v1795, 32
        %v1827 = vpop.permute.xlu0 %1826
        %vm1844 = vcmask 290048
        %1845 = vst.msk [vmem:[#allocation2] sm:$0xf] %vm1844, %v1797
        %1846 = vst.msk [vmem:[#allocation2 + $0x4] sm:$0xf] %vm1844, %v1799
        %1847 = vst.msk [vmem:[#allocation2 + $0x8] sm:$0xf] %vm1844, %v1801
        %1848 = vst.msk [vmem:[#allocation2 + $0xc] sm:$0xf] %vm1844, %v1803
        %1849 = vst.msk [vmem:[#allocation2 + $0x10] sm:$0xf] %vm1844, %v1805
        %1850 = vst.msk [vmem:[#allocation2 + $0x14] sm:$0xf] %vm1844, %v1807
        %1851 = vst.msk [vmem:[#allocation2 + $0x18] sm:$0xf] %vm1844, %v1809
        %1852 = vst.msk [vmem:[#allocation2 + $0x1c] sm:$0xf] %vm1844, %v1811
        %1853 = vst.msk [vmem:[#allocation2 + $0x20] sm:$0xf] %vm1844, %v1813
        %1854 = vst.msk [vmem:[#allocation2 + $0x24] sm:$0xf] %vm1844, %v1815
        %1855 = vst.msk [vmem:[#allocation2 + $0x28] sm:$0xf] %vm1844, %v1817
        %1856 = vst.msk [vmem:[#allocation2 + $0x2c] sm:$0xf] %vm1844, %v1819
        %1857 = vst.msk [vmem:[#allocation2 + $0x30] sm:$0xf] %vm1844, %v1821
        %1858 = vst.msk [vmem:[#allocation2 + $0x34] sm:$0xf] %vm1844, %v1823
        %1859 = vst.msk [vmem:[#allocation2 + $0x38] sm:$0xf] %vm1844, %v1825
        %1860 = vst.msk [vmem:[#allocation2 + $0x3c] sm:$0xf] %vm1844, %v1827
        %v1861 = vld [vmem:[#allocation2] sm:$0xf]
        %v1862 = vld [vmem:[#allocation2 + $0x4] sm:$0xf]
        %v1863 = vld [vmem:[#allocation2 + $0x8] sm:$0xf]
        %v1864 = vld [vmem:[#allocation2 + $0xc] sm:$0xf]
        %v1865 = vld [vmem:[#allocation2 + $0x10] sm:$0xf]
        %v1866 = vld [vmem:[#allocation2 + $0x14] sm:$0xf]
        %v1867 = vld [vmem:[#allocation2 + $0x18] sm:$0xf]
        %v1868 = vld [vmem:[#allocation2 + $0x1c] sm:$0xf]
        %v1869 = vld [vmem:[#allocation2 + $0x20] sm:$0xf]
        %v1870 = vld [vmem:[#allocation2 + $0x24] sm:$0xf]
        %v1871 = vld [vmem:[#allocation2 + $0x28] sm:$0xf]
        %v1872 = vld [vmem:[#allocation2 + $0x2c] sm:$0xf]
        %v1873 = vld [vmem:[#allocation2 + $0x30] sm:$0xf]
        %v1874 = vld [vmem:[#allocation2 + $0x34] sm:$0xf]
        %v1875 = vld [vmem:[#allocation2 + $0x38] sm:$0xf]
        %v1876 = vld [vmem:[#allocation2 + $0x3c] sm:$0xf]
        %v1877 = vld [vmem:[%s257] sm:$0xf]
        %v1878 = vld [vmem:[%s257 + $0x4] sm:$0xf]
        %v1879 = vld [vmem:[%s257 + $0x8] sm:$0xf]
        %v1880 = vld [vmem:[%s257 + $0xc] sm:$0xf]
        %v1881 = vld [vmem:[%s257 + $0x10] sm:$0x3]
        %v1898 = vunpack.c.l.b16 %v1861
        %v1899 = vunpack.c.l.b16 %v1862
        %v1900 = vunpack.c.l.b16 %v1863
        %v1901 = vunpack.c.l.b16 %v1864
        %v1902 = vunpack.c.l.b16 %v1865
        %v1903 = vunpack.c.l.b16 %v1866
        %v1904 = vunpack.c.l.b16 %v1867
        %v1905 = vunpack.c.l.b16 %v1868
        %v1906 = vunpack.c.l.b16 %v1869
        %v1907 = vunpack.c.l.b16 %v1870
        %v1908 = vunpack.c.l.b16 %v1871
        %v1909 = vunpack.c.l.b16 %v1872
        %v1910 = vunpack.c.l.b16 %v1873
        %v1911 = vunpack.c.l.b16 %v1874
        %v1912 = vunpack.c.l.b16 %v1875
        %v1913 = vunpack.c.l.b16 %v1876
        %v1914 = vpack.c.b16 %v1899, %v1898
        %v1915 = vpack.c.b16 %v1901, %v1900
        %v1916 = vpack.c.b16 %v1903, %v1902
        %v1917 = vpack.c.b16 %v1905, %v1904
        %v1918 = vpack.c.b16 %v1907, %v1906
        %v1919 = vpack.c.b16 %v1909, %v1908
        %v1920 = vpack.c.b16 %v1911, %v1910
        %v1921 = vpack.c.b16 %v1913, %v1912
        %v1927 = vunpack.c.l.b16 %v1877
        %v1928 = vunpack.c.l.b16 %v1878
        %v1929 = vunpack.c.l.b16 %v1879
        %v1930 = vunpack.c.l.b16 %v1880
        %v1931 = vunpack.c.l.b16 %v1881
        %v1932 = vpack.c.b16 %v1928, %v1927
        %v1933 = vpack.c.b16 %v1930, %v1929
        %v1934 = vpack.c.b16 %v1931, %v1931
        %vm1937 = vcmask 293888
        %v1939 = vsel %vm1937, %v1914, 0
        %v1942 = vsel %vm1937, %v1915, 0
        %v1945 = vsel %vm1937, %v1916, 0
        %v1948 = vsel %vm1937, %v1917, 0
        %v1951 = vsel %vm1937, %v1918, 0
        %v1954 = vsel %vm1937, %v1919, 0
        %v1957 = vsel %vm1937, %v1920, 0
        %v1960 = vsel %vm1937, %v1921, 0
        %vm1962 = vcmask 1041408
        %v1964 = vsel %vm1962, %v1934, 0
        %1966 = vmatprep.subr.bf16.mxu0 0
        %1967 = vmatpush1.bf16.msra.mxu0 0
        %1968 = vmatprep.subr.bf16.mxu0 0
        %1969 = vmatpush1.bf16.msra.mxu0 0
        %1970 = vmatprep.subr.bf16.mxu0 0
        %1971 = vmatpush1.bf16.msra.mxu0 0
        %1972 = vmatprep.subr.bf16.mxu0 0
        %1973 = vmatpush1.bf16.msra.mxu0 0
        %1974 = vmatprep.subr.bf16.mxu0 0
        %1975 = vmatpush1.bf16.msra.mxu0 0
        %1976 = vmatprep.subr.bf16.mxu0 0
        %1977 = vmatpush1.bf16.msra.mxu0 %v1964
        %1978 = vmatprep.subr.bf16.mxu0 0
        %1979 = vmatpush1.bf16.msra.mxu0 %v1933
        %1980 = vmatprep.subr.bf16.mxu0 0
        %1981 = vmatpush1.bf16.msra.mxu0 %v1932
        %1982 = vmatprep.subr.bf16.mxu0 0
        %1983 = vmatpush2.bf16.msra.mxu0 0
        %1984 = vmatprep.subr.bf16.mxu0 0
        %1985 = vmatpush2.bf16.msra.mxu0 0
        %1986 = vmatprep.subr.bf16.mxu0 0
        %1987 = vmatpush2.bf16.msra.mxu0 0
        %1988 = vmatprep.subr.bf16.mxu0 0
        %1989 = vmatpush2.bf16.msra.mxu0 0
        %1990 = vmatprep.subr.bf16.mxu0 0
        %1991 = vmatpush2.bf16.msra.mxu0 0
        %1992 = vmatprep.subr.bf16.mxu0 0
        %1993 = vmatpush2.bf16.msra.mxu0 0
        %1994 = vmatprep.subr.bf16.mxu0 0
        %1995 = vmatpush2.bf16.msra.mxu0 0
        %1996 = vmatprep.subr.bf16.mxu0 0
        %1997 = vmatpush2.bf16.msra.mxu0 0
        %1998 = vmatprep.mubr.bf16.mxu0 0
        %1999 = vmatmul.mubr.bf16.gmra.mxu0 %v1939
        %v2000 = vpop.f32.mrf.mxu0
        %v2001 = vadd.f32 0.0, %v2000
        %v2002 = vpop.f32.mrf.mxu0
        %v2003 = vpop.f32.mrf.mxu0
        %v2004 = vadd.f32 0.0, %v2003
        %v2005 = vpop.f32.mrf.mxu0
        %2006 = vmatprep.mubr.bf16.mxu0 0
        %2007 = vmatmul.mubr.bf16.gmra.mxu0 %v1942
        %v2008 = vpop.f32.mrf.mxu0
        %v2009 = vadd.f32 0.0, %v2008
        %v2010 = vpop.f32.mrf.mxu0
        %v2011 = vpop.f32.mrf.mxu0
        %v2012 = vadd.f32 0.0, %v2011
        %v2013 = vpop.f32.mrf.mxu0
        %2014 = vmatprep.mubr.bf16.mxu0 0
        %2015 = vmatmul.mubr.bf16.gmra.mxu0 %v1945
        %v2016 = vpop.f32.mrf.mxu0
        %v2017 = vadd.f32 0.0, %v2016
        %v2018 = vpop.f32.mrf.mxu0
        %v2019 = vpop.f32.mrf.mxu0
        %v2020 = vadd.f32 0.0, %v2019
        %v2021 = vpop.f32.mrf.mxu0
        %2022 = vmatprep.mubr.bf16.mxu0 0
        %2023 = vmatmul.mubr.bf16.gmra.mxu0 %v1948
        %v2024 = vpop.f32.mrf.mxu0
        %v2025 = vadd.f32 0.0, %v2024
        %v2026 = vpop.f32.mrf.mxu0
        %v2027 = vpop.f32.mrf.mxu0
        %v2028 = vadd.f32 0.0, %v2027
        %v2029 = vpop.f32.mrf.mxu0
        %2030 = vmatprep.mubr.bf16.mxu0 0
        %2031 = vmatmul.mubr.bf16.gmra.mxu0 %v1951
        %v2032 = vpop.f32.mrf.mxu0
        %v2033 = vadd.f32 0.0, %v2032
        %v2034 = vpop.f32.mrf.mxu0
        %v2035 = vpop.f32.mrf.mxu0
        %v2036 = vadd.f32 0.0, %v2035
        %v2037 = vpop.f32.mrf.mxu0
        %2038 = vmatprep.mubr.bf16.mxu0 0
        %2039 = vmatmul.mubr.bf16.gmra.mxu0 %v1954
        %v2040 = vpop.f32.mrf.mxu0
        %v2041 = vadd.f32 0.0, %v2040
        %v2042 = vpop.f32.mrf.mxu0
        %v2043 = vpop.f32.mrf.mxu0
        %v2044 = vadd.f32 0.0, %v2043
        %v2045 = vpop.f32.mrf.mxu0
        %2046 = vmatprep.mubr.bf16.mxu0 0
        %2047 = vmatmul.mubr.bf16.gmra.mxu0 %v1957
        %v2048 = vpop.f32.mrf.mxu0
        %v2049 = vadd.f32 0.0, %v2048
        %v2050 = vpop.f32.mrf.mxu0
        %v2051 = vpop.f32.mrf.mxu0
        %v2052 = vadd.f32 0.0, %v2051
        %v2053 = vpop.f32.mrf.mxu0
        %2054 = vmatprep.mubr.bf16.mxu0 0
        %2055 = vmatmul.mubr.bf16.gmra.mxu0 %v1960
        %v2056 = vpop.f32.mrf.mxu0
        %v2057 = vadd.f32 0.0, %v2056
        %v2058 = vpop.f32.mrf.mxu0
        %v2059 = vpop.f32.mrf.mxu0
        %v2060 = vadd.f32 0.0, %v2059
        %v2061 = vpop.f32.mrf.mxu0
        %2062 = vdwg.mxu0
        %v2063 = vld [vmem:[%s260] sm:$0x1]
        %v2065 = vlaneseq
        %v2066 = vshrl.u32 %v2065, 7
        %v2067 = vsub.s32 0, %v2066
        %v2068 = vrot.slane %v2063, %v2067
        %v2070 = vmul.f32 %v2001, %v2068
        %v2071 = vmul.f32 %v2004, %v2068
        %v2072 = vmul.f32 %v2009, %v2068
        %v2073 = vmul.f32 %v2012, %v2068
        %v2074 = vmul.f32 %v2017, %v2068
        %v2075 = vmul.f32 %v2020, %v2068
        %v2076 = vmul.f32 %v2025, %v2068
        %v2077 = vmul.f32 %v2028, %v2068
        %v2078 = vmul.f32 %v2033, %v2068
        %v2079 = vmul.f32 %v2036, %v2068
        %v2080 = vmul.f32 %v2041, %v2068
        %v2081 = vmul.f32 %v2044, %v2068
        %v2082 = vmul.f32 %v2049, %v2068
        %v2083 = vmul.f32 %v2052, %v2068
        %v2084 = vmul.f32 %v2057, %v2068
        %v2085 = vmul.f32 %v2060, %v2068
        %v2086 = vld [vmem:[%s263] sm:$0x1]
        %v2088 = vlaneseq
        %v2089 = vshrl.u32 %v2088, 7
        %v2090 = vsub.s32 0, %v2089
        %v2091 = vrot.slane %v2086, %v2090
        %v2093 = vadd.f32 %v2070, %v2091
        %v2094 = vadd.f32 %v2071, %v2091
        %v2095 = vadd.f32 %v2072, %v2091
        %v2096 = vadd.f32 %v2073, %v2091
        %v2097 = vadd.f32 %v2074, %v2091
        %v2098 = vadd.f32 %v2075, %v2091
        %v2099 = vadd.f32 %v2076, %v2091
        %v2100 = vadd.f32 %v2077, %v2091
        %v2101 = vadd.f32 %v2078, %v2091
        %v2102 = vadd.f32 %v2079, %v2091
        %v2103 = vadd.f32 %v2080, %v2091
        %v2104 = vadd.f32 %v2081, %v2091
        %v2105 = vadd.f32 %v2082, %v2091
        %v2106 = vadd.f32 %v2083, %v2091
        %v2107 = vadd.f32 %v2084, %v2091
        %v2108 = vadd.f32 %v2085, %v2091
        %v2109 = vmax.f32 %v2093, 0.0
        %v2110 = vmax.f32 %v2094, 0.0
        %v2111 = vmax.f32 %v2095, 0.0
        %v2112 = vmax.f32 %v2096, 0.0
        %v2113 = vmax.f32 %v2097, 0.0
        %v2114 = vmax.f32 %v2098, 0.0
        %v2115 = vmax.f32 %v2099, 0.0
        %v2116 = vmax.f32 %v2100, 0.0
        %v2117 = vmax.f32 %v2101, 0.0
        %v2118 = vmax.f32 %v2102, 0.0
        %v2119 = vmax.f32 %v2103, 0.0
        %v2120 = vmax.f32 %v2104, 0.0
        %v2121 = vmax.f32 %v2105, 0.0
        %v2122 = vmax.f32 %v2106, 0.0
        %v2123 = vmax.f32 %v2107, 0.0
        %v2124 = vmax.f32 %v2108, 0.0
        %v2125 = vpack.c.bf16 %v2110, %v2109
        %v2126 = vpack.c.bf16 %v2112, %v2111
        %v2127 = vpack.c.bf16 %v2114, %v2113
        %v2128 = vpack.c.bf16 %v2116, %v2115
        %v2129 = vpack.c.bf16 %v2118, %v2117
        %v2130 = vpack.c.bf16 %v2120, %v2119
        %v2131 = vpack.c.bf16 %v2122, %v2121
        %v2132 = vpack.c.bf16 %v2124, %v2123
        %v2141 = vunpack.c.l.b16 %v2125
        %v2142 = vunpack.c.h.b16 %v2125
        %v2143 = vunpack.c.l.b16 %v2126
        %v2144 = vunpack.c.h.b16 %v2126
        %v2145 = vunpack.c.l.b16 %v2127
        %v2146 = vunpack.c.h.b16 %v2127
        %v2147 = vunpack.c.l.b16 %v2128
        %v2148 = vunpack.c.h.b16 %v2128
        %v2149 = vunpack.c.l.b16 %v2129
        %v2150 = vunpack.c.h.b16 %v2129
        %v2151 = vunpack.c.l.b16 %v2130
        %v2152 = vunpack.c.h.b16 %v2130
        %v2153 = vunpack.c.l.b16 %v2131
        %v2154 = vunpack.c.h.b16 %v2131
        %v2155 = vunpack.c.l.b16 %v2132
        %v2156 = vunpack.c.h.b16 %v2132
        %v2157 = vpack.c.b16 %v2141, %v2141
        %v2158 = vpack.c.b16 %v2142, %v2142
        %v2159 = vpack.c.b16 %v2143, %v2143
        %v2160 = vpack.c.b16 %v2144, %v2144
        %v2161 = vpack.c.b16 %v2145, %v2145
        %v2162 = vpack.c.b16 %v2146, %v2146
        %v2163 = vpack.c.b16 %v2147, %v2147
        %v2164 = vpack.c.b16 %v2148, %v2148
        %v2165 = vpack.c.b16 %v2149, %v2149
        %v2166 = vpack.c.b16 %v2150, %v2150
        %v2167 = vpack.c.b16 %v2151, %v2151
        %v2168 = vpack.c.b16 %v2152, %v2152
        %v2169 = vpack.c.b16 %v2153, %v2153
        %v2170 = vpack.c.b16 %v2154, %v2154
        %v2171 = vpack.c.b16 %v2155, %v2155
        %v2172 = vpack.c.b16 %v2156, %v2156
        %2189 = vst [vmem:[%s248] sm:$0xf] %v2157
        %2190 = vst [vmem:[%s248 + $0x4] sm:$0xf] %v2158
        %2191 = vst [vmem:[%s248 + $0x8] sm:$0xf] %v2159
        %2192 = vst [vmem:[%s248 + $0xc] sm:$0xf] %v2160
        %2193 = vst [vmem:[%s248 + $0x10] sm:$0xf] %v2161
        %2194 = vst [vmem:[%s248 + $0x14] sm:$0xf] %v2162
        %2195 = vst [vmem:[%s248 + $0x18] sm:$0xf] %v2163
        %2196 = vst [vmem:[%s248 + $0x1c] sm:$0xf] %v2164
        %2197 = vst [vmem:[%s248 + $0x20] sm:$0xf] %v2165
        %2198 = vst [vmem:[%s248 + $0x24] sm:$0xf] %v2166
        %2199 = vst [vmem:[%s248 + $0x28] sm:$0xf] %v2167
        %2200 = vst [vmem:[%s248 + $0x2c] sm:$0xf] %v2168
        %2201 = vst [vmem:[%s248 + $0x30] sm:$0xf] %v2169
        %2202 = vst [vmem:[%s248 + $0x34] sm:$0xf] %v2170
        %2203 = vst [vmem:[%s248 + $0x38] sm:$0xf] %v2171
        %2204 = vst [vmem:[%s248 + $0x3c] sm:$0xf] %v2172
        %s2205 = sand.u32 %s153, 1
        %s2206 = scalar_lea.sflag [#allocation4], %s2205
        %s2207 = sand.u32 %s153, 1
        %s2208 = smul.addr %s2207, 64
        %s2209 = scalar_lea.vmem [#allocation3], %s2208
        // Predicated region
        $region37: #{tpu_custom_call.1} parent=35 // pred_check
          %p2210 = pneg %p163
        $region38: #{tpu_custom_call.1} parent=35 // pred_check_branch
          %2212 = sbr.rel (%p2210) target = $region40
        $region39: #{tpu_custom_call.1} parent=35 // pred_region
          %s2213 = smul.u32 8, %s25
          %s2215 = ssub.s32 1024, 1024
          %2216 = vsyncadd %s2206, %s2215
          %s2217 = smul.addr %s2213, 2
          %s2218 = sadd.s32 %s24, %s2217
          %s2219 = smul.addr %s23, 32
          %s2220 = sadd.s32 %s2218, %s2219
          %s2221 = smul.addr %s2220, 64
          %s2222 = scalar_lea.hbm %s4, %s2221
          %s2223 = sshll.u32 %s2209, 4
          %s2224 = int_to_ptr.vmem [resolvable:$true] %s2223
          %2229 = dma.vmem_to_hbm [thread:$0]  %s2224, 1024, %s2222, %s2206, 64, 64, 4
        $region40: #{tpu_custom_call.1} parent=35 // pred_fallthru
          _
      $region36: #{tpu_custom_call.1} parent=5 // pred_fallthru
        _
      %p2230 = scmp.le.s32.totalorder 2, %s13
      // Predicated region
      $region41: #{tpu_custom_call.1} parent=5 // pred_check
        %p2231 = pneg %p2230
      $region42: #{tpu_custom_call.1} parent=5 // pred_check_branch
        %2233 = sbr.rel (%p2231) target = $region44
      $region43: #{tpu_custom_call.1} parent=5 // pred_region
        %s2234 = ssub.s32 %s13, 2
        // Predicated region
        $region45: #{tpu_custom_call.1} parent=43 // pred_check
          %p2235 = pneg %p169
        $region46: #{tpu_custom_call.1} parent=43 // pred_check_branch
          %2237 = sbr.rel (%p2235) target = $region48
        $region47: #{tpu_custom_call.1} parent=43 // pred_region
          %s2238 = sand.u32 %s154, 1
          %s2239 = scalar_lea.sflag [#allocation4], %s2238
          %s2240 = sand.u32 %s154, 1
          %s2241 = smul.addr %s2240, 64
          %s2242 = scalar_lea.vmem [#allocation3], %s2241
          %2243 = dma.done %s2239, 1024
        $region48: #{tpu_custom_call.1} parent=43 // pred_fallthru
          _
      $region44: #{tpu_custom_call.1} parent=5 // pred_fallthru
        _
    $region6: #{tpu_custom_call.1} parent=1 // loop_footer
      %s17 = sadd.s32 1, %s13
    $region7: #{tpu_custom_call.1} parent=1 // loop_footer_branch
      %12 = sbr.rel target = $region3
    $region8: #{tpu_custom_call.1} parent=1 // loop_exit
      _
    %2244 = vsyncpa [#allocation4], 1
    %s2245 = scalar_lea.sflag [#allocation4], 1
    %2246 = vsyncpa %s2245, 1

</llo_original>
